<compile_context>
chip_gen: v7x
topology: tpu7x:2x2x1
jax: 0.10.0
libtpu: 0.0.40
codegen_flags: <defaults>
</compile_context>

<pallas_src>
import math
import functools

import jax
import jax.numpy as jnp
from jax import lax
from jax.experimental import pallas as pl
from jax.experimental.pallas import tpu as pltpu

_LANE = 128
_SUBLANE = 8


def _round_up(x, m):
    return ((x + m - 1) // m) * m


def _cdiv(a, b):
    return (a + b - 1) // b


# ----------------------------------------------------------------------------
# Kernel:
#   t_emb = time_emb(t)            (sinusoidal emb computed in-kernel if needed)
#   h     = x + t_emb              (folded into the first matmul, see above)
#   h     = relu(h @ W_i + b_i)    num_layers times
#   out   = h @ W_out + b_out
# All matmuls accumulate in f32 on the MXU; bias add / ReLU stay f32 (v5e has
# no bf16 VPU path).
# ----------------------------------------------------------------------------
def _mlp_time_kernel(num_hidden_layers, input_dim, time_emb_dim,
                     use_sinusoidal, *refs):
    # refs: x, t, wt, bt, (w_i, b_i) * num_hidden_layers, w_out, b_out, out
    x_ref, t_ref, wt_ref, bt_ref = refs[:4]
    layer_refs = refs[4:4 + 2 * num_hidden_layers]
    wout_ref, bout_ref, out_ref = refs[-3], refs[-2], refs[-1]

    cdt = wt_ref.dtype  # matmul-operand compute dtype (f32 or bf16)

    # ---------------- time embedding ----------------
    if use_sinusoidal:
        half = time_emb_dim // 2
        # freqs / sin / cos land on the EUP slot — effectively free here.
        idx = lax.broadcasted_iota(jnp.int32, (1, half), 1).astype(jnp.float32)
        inv_freq = jnp.exp(idx * (-math.log(10000.0) / half))
        angles = t_ref[...].astype(jnp.float32) * inv_freq        # (tile_b, half)
        sin_p = jnp.sin(angles).astype(cdt)
        cos_p = jnp.cos(angles).astype(cdt)
        # [sin | cos] @ Wt  ==  sin @ Wt[:half] + cos @ Wt[half:2*half]
        # (an odd time_emb_dim appends a zero column in the reference, which
        # contributes nothing, so Wt's last row is skipped.)
        t_emb = (jnp.dot(sin_p, wt_ref[0:half, :],
                         preferred_element_type=jnp.float32)
                 + jnp.dot(cos_p, wt_ref[half:2 * half, :],
                           preferred_element_type=jnp.float32))
    else:
        # t is already an embedded (tile_b, time_emb_dim) block.
        t_emb = jnp.dot(t_ref[...].astype(cdt), wt_ref[...],
                        preferred_element_type=jnp.float32)

    pre = t_emb + bt_ref[...]                    # (tile_b, H_pad), f32

    # ---------------- first hidden layer (x folded in) ----------------
    #   relu((x + pre) @ W1 + b1) == relu(x @ W1[:input_dim] + pre @ W1 + b1)
    w1_ref, b1_ref = layer_refs[0], layer_refs[1]
    h = (jnp.dot(x_ref[...].astype(cdt), w1_ref[0:input_dim, :],
                 preferred_element_type=jnp.float32)
         + jnp.dot(pre.astype(cdt), w1_ref[...],
                   preferred_element_type=jnp.float32)
         + b1_ref[...])
    h = jnp.maximum(h, 0.0)

    # ---------------- remaining hidden layers ----------------
    for i in range(1, num_hidden_layers):
        w_ref = layer_refs[2 * i]
        b_ref = layer_refs[2 * i + 1]
        h = jnp.maximum(
            jnp.dot(h.astype(cdt), w_ref[...],
                    preferred_element_type=jnp.float32) + b_ref[...],
            0.0)

    # ---------------- output projection (lane-dense unmasked store) ----------
    out_ref[...] = (jnp.dot(h.astype(cdt), wout_ref[...],
                            preferred_element_type=jnp.float32)
                    + bout_ref[...]).astype(out_ref.dtype)


def sinusoidal_embedding(t, dim):
    """Pure-JAX version, used only by the reference implementation."""
    half_dim = dim // 2
    freqs = jnp.exp(-math.log(10000.0) *
                    jnp.arange(0, half_dim, dtype=jnp.float32) / half_dim)
    freqs = t.astype(jnp.float32)[:, None] * freqs[None, :]
    emb = jnp.concatenate([jnp.sin(freqs), jnp.cos(freqs)], axis=1)
    if dim % 2 == 1:
        emb = jnp.pad(emb, ((0, 0), (0, 1)))
    return emb


class TabularDiffusionModelPallas:
    def __init__(self, continuous_dim, categorical_dims=None, hidden_dim=128,
                 time_emb_dim=64, num_layers=4, *, key,
                 compute_dtype=jnp.float32, out_dtype=jnp.float32,
                 max_tile_b=2048, min_grid_steps=8):
        assert num_layers >= 1, "num_layers must be >= 1"
        self.continuous_dim = continuous_dim
        self.categorical_dims = categorical_dims
        self.hidden_dim = hidden_dim
        self.time_emb_dim = time_emb_dim
        self.num_layers = num_layers
        self.compute_dtype = compute_dtype        # constructor-only
        self.out_dtype = out_dtype
        self.max_tile_b = max_tile_b
        self.min_grid_steps = min_grid_steps

        keys = iter(jax.random.split(key, 64))

        def dense(k, fan_in, fan_out):
            bound = 1.0 / math.sqrt(fan_in)
            kw, kb = jax.random.split(k)
            w = jax.random.uniform(kw, (fan_in, fan_out), jnp.float32,
                                   -bound, bound)
            b = jax.random.uniform(kb, (1, fan_out), jnp.float32,
                                   -bound, bound)
            return w, b

        # Categorical embedding tables.
        self.cat_tables = []
        cat_embed_dim = 0
        if categorical_dims is not None:
            for cat_size in categorical_dims:
                embed_dim = min(16, cat_size // 2 + 1)
                tbl = jax.random.normal(next(keys), (cat_size, embed_dim),
                                        jnp.float32)
                self.cat_tables.append(tbl)
                cat_embed_dim += embed_dim
        self.input_dim = continuous_dim + cat_embed_dim

        # The reference module computes x + t_emb, which requires this:
        assert self.input_dim == hidden_dim, (
            f"TabularDiffusionModel requires input_dim == hidden_dim "
            f"(got input_dim={self.input_dim}, hidden_dim={hidden_dim}) "
            f"because of the `x + t_emb` addition in forward().")

        # Un-padded (logical, f32) parameters — used by reference().
        self.wt, self.bt = dense(next(keys), time_emb_dim, hidden_dim)
        self.hidden_layers = []
        prev = self.input_dim
        for _ in range(num_layers):
            self.hidden_layers.append(dense(next(keys), prev, hidden_dim))
            prev = hidden_dim
        self.w_out, self.b_out = dense(next(keys), hidden_dim, self.input_dim)

        # Lane-dense padded parameters, cast to compute dtype ONCE here.
        self.D_pad = _round_up(self.input_dim, _LANE)
        self.H_pad = _round_up(hidden_dim, _LANE)
        cdt = compute_dtype

        def pad2(a, r, c, dtype):
            out = jnp.zeros((r, c), jnp.float32).at[:a.shape[0],
                                                    :a.shape[1]].set(a)
            return out.astype(dtype)

        # Wt keeps its natural K = time_emb_dim (resident full-shape block);
        # only the output (lane) dim is padded.
        weight_args = [pad2(self.wt, time_emb_dim, self.H_pad, cdt),
                       pad2(self.bt, 1, self.H_pad, jnp.float32)]
        prev_pad = self.H_pad          # == D_pad since input_dim == hidden_dim
        for w, b in self.hidden_layers:
            weight_args += [pad2(w, prev_pad, self.H_pad, cdt),
                            pad2(b, 1, self.H_pad, jnp.float32)]
            prev_pad = self.H_pad
        weight_args += [pad2(self.w_out, self.H_pad, self.D_pad, cdt),
                        pad2(self.b_out, 1, self.D_pad, jnp.float32)]
        self._weight_args = weight_args

    # ------------------------------------------------------------- tile pick
    def _choose_tile_b(self, B):
        # >= min_grid_steps grid steps (both v7x TCs busy + pipeline depth),
        # capped at max_tile_b (per-step overhead amortization on v5e/v6e),
        # multiple of 8 f32 sublanes, never larger than the (rounded) batch.
        tile = _round_up(max(_cdiv(B, self.min_grid_steps), 1), _SUBLANE)
        tile = min(tile, self.max_tile_b, _round_up(B, _SUBLANE))
        return max(tile, _SUBLANE)

    # ---------------------------------------------------------------- forward
    def __call__(self, cont_x, cat_x, t, *, return_padded=False):
        cdt = self.compute_dtype
        if self.categorical_dims is not None and cat_x is not None:
            # TODO(synk): fuse this gather/concat into the kernel via
            # scalar-prefetched indices + resident embedding tables.
            embs = [jnp.take(tbl, cat_x[:, i], axis=0).astype(cdt)
                    for i, tbl in enumerate(self.cat_tables)]
            x = jnp.concatenate([cont_x.astype(cdt)] + embs, axis=-1)
        else:
            x = cont_x.astype(cdt)

        if t.ndim == 1:
            # Raw timesteps: stream a single f32 column, sinusoidal emb is
            # computed inside the kernel.
            t_in = t.astype(jnp.float32).reshape(-1, 1)
            use_sin = True
        else:
            # Already-embedded t: stream it at its natural width.
            t_in = t.astype(cdt)
            use_sin = False

        return self._pallas_forward(x, t_in, use_sin, return_padded)

    def _pallas_forward(self, x, t_in, use_sin, return_padded):
        B, x_w = x.shape
        t_w = t_in.shape[1]
        D_pad, H_pad = self.D_pad, self.H_pad

        tile_b = self._choose_tile_b(B)
        B_pad = _round_up(B, tile_b)
        if B_pad != B:
            x = jnp.pad(x, ((0, B_pad - B), (0, 0)))
            t_in = jnp.pad(t_in, ((0, B_pad - B), (0, 0)))
        grid = (B_pad // tile_b,)

        def tiled(width):
            return pl.BlockSpec((tile_b, width), lambda i: (i, 0))

        def resident(shape):
            # Constant index map: weights stay resident in VMEM across steps.
            # TODO(synk): pipeline_mode=pl.Buffered(1) here for very large
            # hidden_dim on v7x (halves resident-weight VMEM at zero cost).
            return pl.BlockSpec(shape, lambda i: (0, 0))

        in_specs = [tiled(x_w), tiled(t_w)]
        in_specs += [resident(a.shape) for a in self._weight_args]
        out_specs = tiled(D_pad)
        out_shape = jax.ShapeDtypeStruct((B_pad, D_pad), self.out_dtype)

        # VMEM budget: double-buffered streamed blocks + (double-buffered)
        # resident weights + headroom; clamp to the v7x-safe 64 MiB.
        out_isz = jnp.dtype(self.out_dtype).itemsize
        weight_bytes = sum(int(a.size) * a.dtype.itemsize
                           for a in self._weight_args)
        stream_bytes = tile_b * (x_w * x.dtype.itemsize
                                 + t_w * t_in.dtype.itemsize
                                 + D_pad * out_isz)
        vmem_limit = 2 * (weight_bytes + stream_bytes) + (8 << 20)
        vmem_limit = int(min(max(vmem_limit, 32 << 20), 64 << 20))

        # Advisory cost estimate for the XLA scheduler.
        flops = 2 * B_pad * (self.time_emb_dim * H_pad        # time matmul(s)
                             + self.input_dim * H_pad         # x @ W1 slice
                             + H_pad * H_pad                  # pre @ W1
                             + (self.num_layers - 1) * H_pad * H_pad
                             + H_pad * D_pad)
        transcend = B_pad * self.time_emb_dim if use_sin else 0
        bytes_accessed = int(x.size * x.dtype.itemsize
                             + t_in.size * t_in.dtype.itemsize
                             + weight_bytes
                             + B_pad * D_pad * out_isz)
        cost = pl.CostEstimate(flops=int(flops),
                               transcendentals=int(transcend),
                               bytes_accessed=bytes_accessed)

        kernel = functools.partial(_mlp_time_kernel, self.num_layers,
                                   self.input_dim, self.time_emb_dim, use_sin)
        out_padded = pl.pallas_call(
            kernel,
            grid=grid,
            in_specs=in_specs,
            out_specs=out_specs,
            out_shape=out_shape,
            compiler_params=pltpu.CompilerParams(
                dimension_semantics=("parallel",),
                vmem_limit_bytes=vmem_limit),
            cost_estimate=cost,
        )(x, t_in, *self._weight_args)

        if return_padded:
            # Padded columns are exactly zero; safe for downstream consumers.
            return out_padded
        return out_padded[:B, :self.input_dim]

    # Pure-JAX reference (f32, unpadded) for correctness checking.
    def reference(self, cont_x, cat_x, t):
        if self.categorical_dims is not None and cat_x is not None:
            embs = [jnp.take(tbl, cat_x[:, i], axis=0)
                    for i, tbl in enumerate(self.cat_tables)]
            x = jnp.concatenate([cont_x] + embs, axis=-1)
        else:
            x = cont_x
        t_sin = sinusoidal_embedding(t, self.time_emb_dim) if t.ndim == 1 \
            else t.astype(jnp.float32)
        t_emb = t_sin @ self.wt + self.bt
        h = x + t_emb
        for w, b in self.hidden_layers:
            h = jnp.maximum(h @ w + b, 0.0)
        return h @ self.w_out + self.b_out


if __name__ == "__main__":
    # Small shapes. input_dim = 23 + (10//2+1) + (5//2+1) = 23 + 6 + 3 = 32,
    # which equals hidden_dim (required by `x + t_emb` in the reference).
    B = 16
    continuous_dim = 23
    categorical_dims = [10, 5]
    hidden_dim = 32
    time_emb_dim = 16
    num_layers = 4

    key = jax.random.PRNGKey(0)
    k_model, k_cont, k_cat, k_t, k_temb = jax.random.split(key, 5)

    model_f32 = TabularDiffusionModelPallas(
        continuous_dim, categorical_dims, hidden_dim=hidden_dim,
        time_emb_dim=time_emb_dim, num_layers=num_layers, key=k_model,
        compute_dtype=jnp.float32)

    cont_x = jax.random.normal(k_cont, (B, continuous_dim), jnp.float32)
    cat_x = jnp.stack(
        [jax.random.randint(jax.random.fold_in(k_cat, i), (B,), 0, cs)
         for i, cs in enumerate(categorical_dims)], axis=1)
    t = jax.random.randint(k_t, (B,), 0, 1000)

    ref = model_f32.reference(cont_x, cat_x, t)

    # f32 path, raw timesteps (in-kernel sinusoidal embedding).
    out_f32 = jax.block_until_ready(model_f32(cont_x, cat_x, t))
    assert out_f32.shape == (B, model_f32.input_dim)
    assert jnp.allclose(out_f32, ref, atol=1e-3, rtol=1e-3), \
        f"f32 max err {jnp.max(jnp.abs(out_f32 - ref))}"

    # f32 path, pre-embedded t (2D) — exercises the non-sinusoidal branch.
    t_pre = jax.random.normal(k_temb, (B, time_emb_dim), jnp.float32)
    ref_pre = model_f32.reference(cont_x, cat_x, t_pre)
    out_pre = jax.block_until_ready(model_f32(cont_x, cat_x, t_pre))
    assert jnp.allclose(out_pre, ref_pre, atol=1e-3, rtol=1e-3), \
        f"pre-embedded-t max err {jnp.max(jnp.abs(out_pre - ref_pre))}"

    # bf16-operand / f32-accumulation model (same weights: same PRNG key).
    model_bf16 = TabularDiffusionModelPallas(
        continuous_dim, categorical_dims, hidden_dim=hidden_dim,
        time_emb_dim=time_emb_dim, num_layers=num_layers, key=k_model,
        compute_dtype=jnp.bfloat16)
    out_bf16 = jax.block_until_ready(model_bf16(cont_x, cat_x, t))
    assert out_bf16.shape == (B, model_bf16.input_dim)
    assert jnp.allclose(out_bf16, ref, atol=1e-1, rtol=1e-1), \
        f"bf16 max err {jnp.max(jnp.abs(out_bf16 - ref))}"

    print("KERNEL_OK")
</pallas_src>

<mosaic_0001>
module attributes {stable_mosaic.version = 11 : i64} {
  func.func @_mlp_time_kernel(%arg0: i32, %arg1: memref<8x32xf32, #tpu.memory_space<vmem>>, %arg2: memref<8x1xf32, #tpu.memory_space<vmem>>, %arg3: memref<16x128xf32, #tpu.memory_space<vmem>>, %arg4: memref<1x128xf32, #tpu.memory_space<vmem>>, %arg5: memref<128x128xf32, #tpu.memory_space<vmem>>, %arg6: memref<1x128xf32, #tpu.memory_space<vmem>>, %arg7: memref<128x128xf32, #tpu.memory_space<vmem>>, %arg8: memref<1x128xf32, #tpu.memory_space<vmem>>, %arg9: memref<128x128xf32, #tpu.memory_space<vmem>>, %arg10: memref<1x128xf32, #tpu.memory_space<vmem>>, %arg11: memref<128x128xf32, #tpu.memory_space<vmem>>, %arg12: memref<1x128xf32, #tpu.memory_space<vmem>>, %arg13: memref<128x128xf32, #tpu.memory_space<vmem>>, %arg14: memref<1x128xf32, #tpu.memory_space<vmem>>, %arg15: memref<8x128xf32, #tpu.memory_space<vmem>>) attributes {dimension_semantics = [#tpu.dimension_semantics<parallel>], iteration_bounds = array<i64: 2>, scalar_prefetch = 0 : i64, scratch_operands = 0 : i64, tpu.core_type = #tpu.core_type<tc>, window_params = [{transform_indices = @transform_0, window_bounds = array<i64: 8, 32>}, {transform_indices = @transform_1, window_bounds = array<i64: 8, 1>}, {pipeline_mode = #tpu.pipeline_mode<synchronous>, transform_indices = @transform_2, window_bounds = array<i64: 16, 128>}, {pipeline_mode = #tpu.pipeline_mode<synchronous>, transform_indices = @transform_3, window_bounds = array<i64: 1, 128>}, {pipeline_mode = #tpu.pipeline_mode<synchronous>, transform_indices = @transform_4, window_bounds = array<i64: 128, 128>}, {pipeline_mode = #tpu.pipeline_mode<synchronous>, transform_indices = @transform_5, window_bounds = array<i64: 1, 128>}, {pipeline_mode = #tpu.pipeline_mode<synchronous>, transform_indices = @transform_6, window_bounds = array<i64: 128, 128>}, {pipeline_mode = #tpu.pipeline_mode<synchronous>, transform_indices = @transform_7, window_bounds = array<i64: 1, 128>}, {pipeline_mode = #tpu.pipeline_mode<synchronous>, transform_indices = @transform_8, window_bounds = array<i64: 128, 128>}, {pipeline_mode = #tpu.pipeline_mode<synchronous>, transform_indices = @transform_9, window_bounds = array<i64: 1, 128>}, {pipeline_mode = #tpu.pipeline_mode<synchronous>, transform_indices = @transform_10, window_bounds = array<i64: 128, 128>}, {pipeline_mode = #tpu.pipeline_mode<synchronous>, transform_indices = @transform_11, window_bounds = array<i64: 1, 128>}, {pipeline_mode = #tpu.pipeline_mode<synchronous>, transform_indices = @transform_12, window_bounds = array<i64: 128, 128>}, {pipeline_mode = #tpu.pipeline_mode<synchronous>, transform_indices = @transform_13, window_bounds = array<i64: 1, 128>}, {transform_indices = @transform_14, window_bounds = array<i64: 8, 128>}]} {
    %0 = tpu.iota {dimensions = array<i32: 1>} : vector<1x8xi32>
    %1 = arith.sitofp %0 : vector<1x8xi32> to vector<1x8xf32>
    %cst = arith.constant -1.15129256 : f32
    %2 = vector.broadcast %cst : f32 to vector<1x8xf32>
    %3 = arith.mulf %1, %2 : vector<1x8xf32>
    %4 = math.exp %3 : vector<1x8xf32>
    %c0 = arith.constant 0 : index
    %c0_0 = arith.constant 0 : index
    %5 = vector.load %arg2[%c0, %c0_0] : memref<8x1xf32, #tpu.memory_space<vmem>>, vector<8x1xf32>
    %6 = vector.broadcast %5 : vector<8x1xf32> to vector<8x8xf32>
    %7 = vector.broadcast %4 : vector<1x8xf32> to vector<8x8xf32>
    %8 = arith.mulf %6, %7 : vector<8x8xf32>
    %9 = math.sin %8 : vector<8x8xf32>
    %10 = math.cos %8 : vector<8x8xf32>
    %c0_1 = arith.constant 0 : index
    %c0_2 = arith.constant 0 : index
    %11 = vector.load %arg3[%c0_1, %c0_2] : memref<16x128xf32, #tpu.memory_space<vmem>>, vector<8x128xf32>
    %cst_3 = arith.constant dense<0.000000e+00> : vector<8x128xf32>
    %12 = tpu.matmul %9, %11, %cst_3 {dimension_numbers = #tpu.dot_dimension_numbers<[1], [0], [0], [1], [0, 0, 1, 1], [], []>} : vector<8x8xf32>, vector<8x128xf32>, vector<8x128xf32> -> vector<8x128xf32>
    %c8 = arith.constant 8 : index
    %c0_4 = arith.constant 0 : index
    %13 = vector.load %arg3[%c8, %c0_4] : memref<16x128xf32, #tpu.memory_space<vmem>>, vector<8x128xf32>
    %cst_5 = arith.constant dense<0.000000e+00> : vector<8x128xf32>
    %14 = tpu.matmul %10, %13, %cst_5 {dimension_numbers = #tpu.dot_dimension_numbers<[1], [0], [0], [1], [0, 0, 1, 1], [], []>} : vector<8x8xf32>, vector<8x128xf32>, vector<8x128xf32> -> vector<8x128xf32>
    %15 = arith.addf %12, %14 : vector<8x128xf32>
    %c0_6 = arith.constant 0 : index
    %c0_7 = arith.constant 0 : index
    %16 = vector.load %arg4[%c0_6, %c0_7] : memref<1x128xf32, #tpu.memory_space<vmem>>, vector<1x128xf32>
    %17 = vector.broadcast %16 : vector<1x128xf32> to vector<8x128xf32>
    %18 = arith.addf %15, %17 : vector<8x128xf32>
    %c0_8 = arith.constant 0 : index
    %c0_9 = arith.constant 0 : index
    %19 = vector.load %arg1[%c0_8, %c0_9] : memref<8x32xf32, #tpu.memory_space<vmem>>, vector<8x32xf32>
    %c0_10 = arith.constant 0 : index
    %c0_11 = arith.constant 0 : index
    %20 = vector.load %arg5[%c0_10, %c0_11] : memref<128x128xf32, #tpu.memory_space<vmem>>, vector<32x128xf32>
    %cst_12 = arith.constant dense<0.000000e+00> : vector<8x128xf32>
    %21 = tpu.matmul %19, %20, %cst_12 {dimension_numbers = #tpu.dot_dimension_numbers<[1], [0], [0], [1], [0, 0, 1, 1], [], []>} : vector<8x32xf32>, vector<32x128xf32>, vector<8x128xf32> -> vector<8x128xf32>
    %c0_13 = arith.constant 0 : index
    %c0_14 = arith.constant 0 : index
    %22 = vector.load %arg5[%c0_13, %c0_14] : memref<128x128xf32, #tpu.memory_space<vmem>>, vector<128x128xf32>
    %cst_15 = arith.constant dense<0.000000e+00> : vector<8x128xf32>
    %23 = tpu.matmul %18, %22, %cst_15 {dimension_numbers = #tpu.dot_dimension_numbers<[1], [0], [0], [1], [0, 0, 1, 1], [], []>} : vector<8x128xf32>, vector<128x128xf32>, vector<8x128xf32> -> vector<8x128xf32>
    %24 = arith.addf %21, %23 : vector<8x128xf32>
    %c0_16 = arith.constant 0 : index
    %c0_17 = arith.constant 0 : index
    %25 = vector.load %arg6[%c0_16, %c0_17] : memref<1x128xf32, #tpu.memory_space<vmem>>, vector<1x128xf32>
    %26 = vector.broadcast %25 : vector<1x128xf32> to vector<8x128xf32>
    %27 = arith.addf %24, %26 : vector<8x128xf32>
    %cst_18 = arith.constant 0.000000e+00 : f32
    %28 = vector.broadcast %cst_18 : f32 to vector<8x128xf32>
    %29 = arith.maximumf %27, %28 : vector<8x128xf32>
    %c0_19 = arith.constant 0 : index
    %c0_20 = arith.constant 0 : index
    %30 = vector.load %arg7[%c0_19, %c0_20] : memref<128x128xf32, #tpu.memory_space<vmem>>, vector<128x128xf32>
    %cst_21 = arith.constant dense<0.000000e+00> : vector<8x128xf32>
    %31 = tpu.matmul %29, %30, %cst_21 {dimension_numbers = #tpu.dot_dimension_numbers<[1], [0], [0], [1], [0, 0, 1, 1], [], []>} : vector<8x128xf32>, vector<128x128xf32>, vector<8x128xf32> -> vector<8x128xf32>
    %c0_22 = arith.constant 0 : index
    %c0_23 = arith.constant 0 : index
    %32 = vector.load %arg8[%c0_22, %c0_23] : memref<1x128xf32, #tpu.memory_space<vmem>>, vector<1x128xf32>
    %33 = vector.broadcast %32 : vector<1x128xf32> to vector<8x128xf32>
    %34 = arith.addf %31, %33 : vector<8x128xf32>
    %cst_24 = arith.constant 0.000000e+00 : f32
    %35 = vector.broadcast %cst_24 : f32 to vector<8x128xf32>
    %36 = arith.maximumf %34, %35 : vector<8x128xf32>
    %c0_25 = arith.constant 0 : index
    %c0_26 = arith.constant 0 : index
    %37 = vector.load %arg9[%c0_25, %c0_26] : memref<128x128xf32, #tpu.memory_space<vmem>>, vector<128x128xf32>
    %cst_27 = arith.constant dense<0.000000e+00> : vector<8x128xf32>
    %38 = tpu.matmul %36, %37, %cst_27 {dimension_numbers = #tpu.dot_dimension_numbers<[1], [0], [0], [1], [0, 0, 1, 1], [], []>} : vector<8x128xf32>, vector<128x128xf32>, vector<8x128xf32> -> vector<8x128xf32>
    %c0_28 = arith.constant 0 : index
    %c0_29 = arith.constant 0 : index
    %39 = vector.load %arg10[%c0_28, %c0_29] : memref<1x128xf32, #tpu.memory_space<vmem>>, vector<1x128xf32>
    %40 = vector.broadcast %39 : vector<1x128xf32> to vector<8x128xf32>
    %41 = arith.addf %38, %40 : vector<8x128xf32>
    %cst_30 = arith.constant 0.000000e+00 : f32
    %42 = vector.broadcast %cst_30 : f32 to vector<8x128xf32>
    %43 = arith.maximumf %41, %42 : vector<8x128xf32>
    %c0_31 = arith.constant 0 : index
    %c0_32 = arith.constant 0 : index
    %44 = vector.load %arg11[%c0_31, %c0_32] : memref<128x128xf32, #tpu.memory_space<vmem>>, vector<128x128xf32>
    %cst_33 = arith.constant dense<0.000000e+00> : vector<8x128xf32>
    %45 = tpu.matmul %43, %44, %cst_33 {dimension_numbers = #tpu.dot_dimension_numbers<[1], [0], [0], [1], [0, 0, 1, 1], [], []>} : vector<8x128xf32>, vector<128x128xf32>, vector<8x128xf32> -> vector<8x128xf32>
    %c0_34 = arith.constant 0 : index
    %c0_35 = arith.constant 0 : index
    %46 = vector.load %arg12[%c0_34, %c0_35] : memref<1x128xf32, #tpu.memory_space<vmem>>, vector<1x128xf32>
    %47 = vector.broadcast %46 : vector<1x128xf32> to vector<8x128xf32>
    %48 = arith.addf %45, %47 : vector<8x128xf32>
    %cst_36 = arith.constant 0.000000e+00 : f32
    %49 = vector.broadcast %cst_36 : f32 to vector<8x128xf32>
    %50 = arith.maximumf %48, %49 : vector<8x128xf32>
    %c0_37 = arith.constant 0 : index
    %c0_38 = arith.constant 0 : index
    %51 = vector.load %arg13[%c0_37, %c0_38] : memref<128x128xf32, #tpu.memory_space<vmem>>, vector<128x128xf32>
    %cst_39 = arith.constant dense<0.000000e+00> : vector<8x128xf32>
    %52 = tpu.matmul %50, %51, %cst_39 {dimension_numbers = #tpu.dot_dimension_numbers<[1], [0], [0], [1], [0, 0, 1, 1], [], []>} : vector<8x128xf32>, vector<128x128xf32>, vector<8x128xf32> -> vector<8x128xf32>
    %c0_40 = arith.constant 0 : index
    %c0_41 = arith.constant 0 : index
    %53 = vector.load %arg14[%c0_40, %c0_41] : memref<1x128xf32, #tpu.memory_space<vmem>>, vector<1x128xf32>
    %54 = vector.broadcast %53 : vector<1x128xf32> to vector<8x128xf32>
    %55 = arith.addf %52, %54 : vector<8x128xf32>
    %c0_42 = arith.constant 0 : index
    %c0_43 = arith.constant 0 : index
    %56 = vector.load %arg15[%c0_42, %c0_43] : memref<8x128xf32, #tpu.memory_space<vmem>>, vector<8x128xf32>
    tpu.vector_store %arg15[%c0_42, %c0_43], %55 {strides = array<i32>} : memref<8x128xf32, #tpu.memory_space<vmem>>, vector<8x128xf32>,
    return
  }
  func.func @transform_0(%arg0: i32) -> (i32, i32) {
    %c0_i32 = arith.constant 0 : i32
    %c0_i32_0 = arith.constant 0 : i32
    return %arg0, %c0_i32 : i32, i32
  }
  func.func @transform_1(%arg0: i32) -> (i32, i32) {
    %c0_i32 = arith.constant 0 : i32
    %c0_i32_0 = arith.constant 0 : i32
    return %arg0, %c0_i32 : i32, i32
  }
  func.func @transform_2(%arg0: i32) -> (i32, i32) {
    %c0_i32 = arith.constant 0 : i32
    %c0_i32_0 = arith.constant 0 : i32
    %c0_i32_1 = arith.constant 0 : i32
    return %c0_i32, %c0_i32_0 : i32, i32
  }
  func.func @transform_3(%arg0: i32) -> (i32, i32) {
    %c0_i32 = arith.constant 0 : i32
    %c0_i32_0 = arith.constant 0 : i32
    %c0_i32_1 = arith.constant 0 : i32
    return %c0_i32, %c0_i32_0 : i32, i32
  }
  func.func @transform_4(%arg0: i32) -> (i32, i32) {
    %c0_i32 = arith.constant 0 : i32
    %c0_i32_0 = arith.constant 0 : i32
    %c0_i32_1 = arith.constant 0 : i32
    return %c0_i32, %c0_i32_0 : i32, i32
  }
  func.func @transform_5(%arg0: i32) -> (i32, i32) {
    %c0_i32 = arith.constant 0 : i32
    %c0_i32_0 = arith.constant 0 : i32
    %c0_i32_1 = arith.constant 0 : i32
    return %c0_i32, %c0_i32_0 : i32, i32
  }
  func.func @transform_6(%arg0: i32) -> (i32, i32) {
    %c0_i32 = arith.constant 0 : i32
    %c0_i32_0 = arith.constant 0 : i32
    %c0_i32_1 = arith.constant 0 : i32
    return %c0_i32, %c0_i32_0 : i32, i32
  }
  func.func @transform_7(%arg0: i32) -> (i32, i32) {
    %c0_i32 = arith.constant 0 : i32
    %c0_i32_0 = arith.constant 0 : i32
    %c0_i32_1 = arith.constant 0 : i32
    return %c0_i32, %c0_i32_0 : i32, i32
  }
  func.func @transform_8(%arg0: i32) -> (i32, i32) {
    %c0_i32 = arith.constant 0 : i32
    %c0_i32_0 = arith.constant 0 : i32
    %c0_i32_1 = arith.constant 0 : i32
    return %c0_i32, %c0_i32_0 : i32, i32
  }
  func.func @transform_9(%arg0: i32) -> (i32, i32) {
    %c0_i32 = arith.constant 0 : i32
    %c0_i32_0 = arith.constant 0 : i32
    %c0_i32_1 = arith.constant 0 : i32
    return %c0_i32, %c0_i32_0 : i32, i32
  }
  func.func @transform_10(%arg0: i32) -> (i32, i32) {
    %c0_i32 = arith.constant 0 : i32
    %c0_i32_0 = arith.constant 0 : i32
    %c0_i32_1 = arith.constant 0 : i32
    return %c0_i32, %c0_i32_0 : i32, i32
  }
  func.func @transform_11(%arg0: i32) -> (i32, i32) {
    %c0_i32 = arith.constant 0 : i32
    %c0_i32_0 = arith.constant 0 : i32
    %c0_i32_1 = arith.constant 0 : i32
    return %c0_i32, %c0_i32_0 : i32, i32
  }
  func.func @transform_12(%arg0: i32) -> (i32, i32) {
    %c0_i32 = arith.constant 0 : i32
    %c0_i32_0 = arith.constant 0 : i32
    %c0_i32_1 = arith.constant 0 : i32
    return %c0_i32, %c0_i32_0 : i32, i32
  }
  func.func @transform_13(%arg0: i32) -> (i32, i32) {
    %c0_i32 = arith.constant 0 : i32
    %c0_i32_0 = arith.constant 0 : i32
    %c0_i32_1 = arith.constant 0 : i32
    return %c0_i32, %c0_i32_0 : i32, i32
  }
  func.func @transform_14(%arg0: i32) -> (i32, i32) {
    %c0_i32 = arith.constant 0 : i32
    %c0_i32_0 = arith.constant 0 : i32
    return %arg0, %c0_i32 : i32, i32
  }
}

</mosaic_0001>

<llo_original>
// kernel: tpu_custom_call.1
$region0: #{tpu_custom_call.1}
  #allocation0 [shape = 'u32[]', space=smem, size = 0x4, offset = 0x4, fixed_abs, tag = 'smem constant byte address 0x4 - core index']
  #allocation1 [shape = 'u32[144,128]{1,0:T(1,128)}', space=vmem, size = 0x12000, scoped, tag = 'internal scratch']
  %s0 = inlined_call_operand.vmem [shape: f32[16,32], index: 0, kind: input, shape index: {}]
  %s1 = inlined_call_operand.vmem [shape: f32[16,1], index: 1, kind: input, shape index: {}]
  %s2 = inlined_call_operand.hbm [shape: f32[16,128], index: 2, kind: input, shape index: {}]
  %s3 = inlined_call_operand.vmem [shape: f32[1,128], index: 3, kind: input, shape index: {}]
  %s4 = inlined_call_operand.hbm [shape: f32[128,128], index: 4, kind: input, shape index: {}]
  %s5 = inlined_call_operand.vmem [shape: f32[1,128], index: 5, kind: input, shape index: {}]
  %s6 = inlined_call_operand.hbm [shape: f32[128,128], index: 6, kind: input, shape index: {}]
  %s7 = inlined_call_operand.vmem [shape: f32[1,128], index: 7, kind: input, shape index: {}]
  %s8 = inlined_call_operand.hbm [shape: f32[128,128], index: 8, kind: input, shape index: {}]
  %s9 = inlined_call_operand.vmem [shape: f32[1,128], index: 9, kind: input, shape index: {}]
  %s10 = inlined_call_operand.hbm [shape: f32[128,128], index: 10, kind: input, shape index: {}]
  %s11 = inlined_call_operand.vmem [shape: f32[1,128], index: 11, kind: input, shape index: {}]
  %s12 = inlined_call_operand.hbm [shape: f32[128,128], index: 12, kind: input, shape index: {}]
  %s13 = inlined_call_operand.vmem [shape: f32[1,128], index: 13, kind: input, shape index: {}]
  %s14 = inlined_call_operand.hbm [shape: f32[16,128], index: 14, kind: output, shape index: {}]
  %s15 = sld [smem:[#allocation0]]
  $region113: #{tpu_custom_call.1} parent=0
    _
  %s17 = ssub.s32 1, %s15
  %s18 = scalar_select 0, %s17, %s15
  $region1: #{tpu_custom_call.1} parent=0
    #allocation2 [shape = 'u8[8192]{0}', space=vmem, size = 0x2000, scoped, tag = 'input window, operand 2, single buffered']
    #allocation3 [shape = 's32[2]{0}', space=sflag, size = 0x8, scoped, tag = 'scoped memory for tpu_custom_call.1']
    #allocation4 [shape = 's32[2]{0}', space=sflag, size = 0x8, scoped, tag = 'scoped memory for tpu_custom_call.1']
    #allocation5 [shape = 'u8[65536]{0}', space=vmem, size = 0x10000, scoped, tag = 'input window, operand 4, single buffered']
    #allocation6 [shape = 's32[1]{0}', space=sflag, size = 0x4, scoped, tag = 'scoped memory for tpu_custom_call.1']
    #allocation7 [shape = 'u8[65536]{0}', space=vmem, size = 0x10000, scoped, tag = 'input window, operand 6, single buffered']
    #allocation8 [shape = 'u8[65536]{0}', space=vmem, size = 0x10000, scoped, tag = 'input window, operand 8, single buffered']
    #allocation9 [shape = 's32[1]{0}', space=sflag, size = 0x4, scoped, tag = 'scoped memory for tpu_custom_call.1']
    #allocation10 [shape = 'u8[65536]{0}', space=vmem, size = 0x10000, scoped, tag = 'input window, operand 10, single buffered']
    #allocation11 [shape = 'u8[65536]{0}', space=vmem, size = 0x10000, scoped, tag = 'input window, operand 12, single buffered']
    #allocation12 [shape = 's32[1]{0}', space=sflag, size = 0x4, scoped, tag = 'scoped memory for tpu_custom_call.1']
    #allocation13 [shape = 'u8[8192]{0}', space=vmem, size = 0x2000, scoped, tag = 'output window, operand 0']
    %19 = vsyncpa [#allocation3], 0
    %20 = vsyncpa [#allocation6], 0
    %21 = vsyncpa [#allocation9], 0
    %22 = vsyncpa [#allocation12], 0
    %23 = vsyncpa [#allocation4], 0
    %s24 = scalar_lea.sflag [#allocation4], 1
    %25 = vsyncpa %s24, 0
    loop: start=0, step=1, limit=4
    $region2: #{tpu_custom_call.1} parent=1 // loop_pre_header
      _
    $region3: #{tpu_custom_call.1} parent=1 // loop_header
      %s27 = sphi 0, %s31
      %p28 = scmp.ge.s32.totalorder %s27, 4
      %s37 = sphi 0, %s39
      %s40 = sphi 0, %s37
      %s41 = sphi 0, %s40
      %s57 = sphi 0, %s41
      %s63 = sphi 0, %s65
      %s66 = sphi 0, %s63
      %s67 = sphi 0, %s66
      %s83 = sphi 0, %s67
      %s87 = sphi 0, %s87
      %s89 = sphi 0, %s87
      %s90 = sphi 0, %s89
      %s104 = sphi 0, %s90
      %s108 = sphi 0, %s108
      %s110 = sphi 0, %s108
      %s111 = sphi 0, %s110
      %s125 = sphi 0, %s111
      %s129 = sphi 0, %s129
      %s131 = sphi 0, %s129
      %s132 = sphi 0, %s131
      %s146 = sphi 0, %s132
      %s150 = sphi 0, %s150
      %s152 = sphi 0, %s150
      %s153 = sphi 0, %s152
      %s167 = sphi 0, %s153
      %s171 = sphi 0, %s171
      %s173 = sphi 0, %s171
      %s174 = sphi 0, %s173
      %s188 = sphi 0, %s174
      %s192 = sphi 0, %s192
      %s194 = sphi 0, %s192
      %s195 = sphi 0, %s194
      %s209 = sphi 0, %s195
      %s213 = sphi 0, %s213
      %s215 = sphi 0, %s213
      %s216 = sphi 0, %s215
      %s230 = sphi 0, %s216
      %s234 = sphi 0, %s234
      %s236 = sphi 0, %s234
      %s237 = sphi 0, %s236
      %s251 = sphi 0, %s237
      %s255 = sphi 0, %s255
      %s257 = sphi 0, %s255
      %s258 = sphi 0, %s257
      %s272 = sphi 0, %s258
      %s276 = sphi 0, %s276
      %s278 = sphi 0, %s276
      %s279 = sphi 0, %s278
      %s293 = sphi 0, %s279
      %s297 = sphi 0, %s297
      %s299 = sphi 0, %s297
      %s300 = sphi 0, %s299
      %s314 = sphi 0, %s300
      %s318 = sphi 0, %s318
      %s320 = sphi 0, %s318
      %s321 = sphi 0, %s320
      %s335 = sphi 0, %s321
      %s341 = sphi 0, %s343
      %s344 = sphi 0, %s341
      %s345 = sphi 0, %s344
      %s361 = sphi 0, %s345
    $region4: #{tpu_custom_call.1} parent=1 // loop_header_branch
      %30 = sbr.rel (%p28) target = $region8
    $region5: #{tpu_custom_call.1} parent=1 // loop_body
      %s32 = ssub.s32 %s27, 1
      %s33 = ssub.s32 %s27, 2
      %s34 = sadd.s32 %s27, 1
      %s35 = ssub.s32 %s27, %s34
      %p36 = scmp.eq.s32.totalorder %s35, 0
      %s38 = sadd.s32 %s37, 1
      %s39 = scalar_select %p36, %s37, %s38
      %p42 = pneg %p36
      %p43 = scmp.eq.s32.totalorder %s27, 1
      %p44 = por %p42, %p43
      %p45 = scmp.ne.s32.totalorder %s37, %s40
      %p46 = scmp.eq.s32.totalorder %s27, 0
      %p47 = por %p45, %p46
      %p48 = scmp.ne.s32.totalorder %s37, %s40
      %p49 = scmp.eq.s32.totalorder %s32, 1
      %p50 = por %p48, %p49
      %p51 = scmp.ne.s32.totalorder %s40, %s41
      %p52 = scmp.eq.s32.totalorder %s32, 0
      %p53 = por %p51, %p52
      %p54 = scmp.ne.s32.totalorder %s40, %s41
      %p55 = scmp.eq.s32.totalorder %s33, 1
      %p56 = por %p54, %p55
      %p58 = scmp.ne.s32.totalorder %s41, %s57
      %p59 = scmp.eq.s32.totalorder %s33, 0
      %p60 = por %p58, %p59
      %s61 = ssub.s32 %s27, %s34
      %p62 = scmp.eq.s32.totalorder %s61, 0
      %s64 = sadd.s32 %s63, 1
      %s65 = scalar_select %p62, %s63, %s64
      %p68 = pneg %p62
      %p69 = scmp.eq.s32.totalorder %s27, 1
      %p70 = por %p68, %p69
      %p71 = scmp.ne.s32.totalorder %s63, %s66
      %p72 = scmp.eq.s32.totalorder %s27, 0
      %p73 = por %p71, %p72
      %p74 = scmp.ne.s32.totalorder %s63, %s66
      %p75 = scmp.eq.s32.totalorder %s32, 1
      %p76 = por %p74, %p75
      %p77 = scmp.ne.s32.totalorder %s66, %s67
      %p78 = scmp.eq.s32.totalorder %s32, 0
      %p79 = por %p77, %p78
      %p80 = scmp.ne.s32.totalorder %s66, %s67
      %p81 = scmp.eq.s32.totalorder %s33, 1
      %p82 = por %p80, %p81
      %p84 = scmp.ne.s32.totalorder %s67, %s83
      %p85 = scmp.eq.s32.totalorder %s33, 0
      %p86 = por %p84, %p85
      %s88 = sadd.s32 %s87, 1
      %p91 = scmp.eq.s32.totalorder %s27, 1
      %p92 = scmp.ne.s32.totalorder %s87, %s89
      %p93 = scmp.eq.s32.totalorder %s27, 0
      %p94 = por %p92, %p93
      %p95 = scmp.ne.s32.totalorder %s87, %s89
      %p96 = scmp.eq.s32.totalorder %s32, 1
      %p97 = por %p95, %p96
      %p98 = scmp.ne.s32.totalorder %s89, %s90
      %p99 = scmp.eq.s32.totalorder %s32, 0
      %p100 = por %p98, %p99
      %p101 = scmp.ne.s32.totalorder %s89, %s90
      %p102 = scmp.eq.s32.totalorder %s33, 1
      %p103 = por %p101, %p102
      %p105 = scmp.ne.s32.totalorder %s90, %s104
      %p106 = scmp.eq.s32.totalorder %s33, 0
      %p107 = por %p105, %p106
      %s109 = sadd.s32 %s108, 1
      %p112 = scmp.eq.s32.totalorder %s27, 1
      %p113 = scmp.ne.s32.totalorder %s108, %s110
      %p114 = scmp.eq.s32.totalorder %s27, 0
      %p115 = por %p113, %p114
      %p116 = scmp.ne.s32.totalorder %s108, %s110
      %p117 = scmp.eq.s32.totalorder %s32, 1
      %p118 = por %p116, %p117
      %p119 = scmp.ne.s32.totalorder %s110, %s111
      %p120 = scmp.eq.s32.totalorder %s32, 0
      %p121 = por %p119, %p120
      %p122 = scmp.ne.s32.totalorder %s110, %s111
      %p123 = scmp.eq.s32.totalorder %s33, 1
      %p124 = por %p122, %p123
      %p126 = scmp.ne.s32.totalorder %s111, %s125
      %p127 = scmp.eq.s32.totalorder %s33, 0
      %p128 = por %p126, %p127
      %s130 = sadd.s32 %s129, 1
      %p133 = scmp.eq.s32.totalorder %s27, 1
      %p134 = scmp.ne.s32.totalorder %s129, %s131
      %p135 = scmp.eq.s32.totalorder %s27, 0
      %p136 = por %p134, %p135
      %p137 = scmp.ne.s32.totalorder %s129, %s131
      %p138 = scmp.eq.s32.totalorder %s32, 1
      %p139 = por %p137, %p138
      %p140 = scmp.ne.s32.totalorder %s131, %s132
      %p141 = scmp.eq.s32.totalorder %s32, 0
      %p142 = por %p140, %p141
      %p143 = scmp.ne.s32.totalorder %s131, %s132
      %p144 = scmp.eq.s32.totalorder %s33, 1
      %p145 = por %p143, %p144
      %p147 = scmp.ne.s32.totalorder %s132, %s146
      %p148 = scmp.eq.s32.totalorder %s33, 0
      %p149 = por %p147, %p148
      %s151 = sadd.s32 %s150, 1
      %p154 = scmp.eq.s32.totalorder %s27, 1
      %p155 = scmp.ne.s32.totalorder %s150, %s152
      %p156 = scmp.eq.s32.totalorder %s27, 0
      %p157 = por %p155, %p156
      %p158 = scmp.ne.s32.totalorder %s150, %s152
      %p159 = scmp.eq.s32.totalorder %s32, 1
      %p160 = por %p158, %p159
      %p161 = scmp.ne.s32.totalorder %s152, %s153
      %p162 = scmp.eq.s32.totalorder %s32, 0
      %p163 = por %p161, %p162
      %p164 = scmp.ne.s32.totalorder %s152, %s153
      %p165 = scmp.eq.s32.totalorder %s33, 1
      %p166 = por %p164, %p165
      %p168 = scmp.ne.s32.totalorder %s153, %s167
      %p169 = scmp.eq.s32.totalorder %s33, 0
      %p170 = por %p168, %p169
      %s172 = sadd.s32 %s171, 1
      %p175 = scmp.eq.s32.totalorder %s27, 1
      %p176 = scmp.ne.s32.totalorder %s171, %s173
      %p177 = scmp.eq.s32.totalorder %s27, 0
      %p178 = por %p176, %p177
      %p179 = scmp.ne.s32.totalorder %s171, %s173
      %p180 = scmp.eq.s32.totalorder %s32, 1
      %p181 = por %p179, %p180
      %p182 = scmp.ne.s32.totalorder %s173, %s174
      %p183 = scmp.eq.s32.totalorder %s32, 0
      %p184 = por %p182, %p183
      %p185 = scmp.ne.s32.totalorder %s173, %s174
      %p186 = scmp.eq.s32.totalorder %s33, 1
      %p187 = por %p185, %p186
      %p189 = scmp.ne.s32.totalorder %s174, %s188
      %p190 = scmp.eq.s32.totalorder %s33, 0
      %p191 = por %p189, %p190
      %s193 = sadd.s32 %s192, 1
      %p196 = scmp.eq.s32.totalorder %s27, 1
      %p197 = scmp.ne.s32.totalorder %s192, %s194
      %p198 = scmp.eq.s32.totalorder %s27, 0
      %p199 = por %p197, %p198
      %p200 = scmp.ne.s32.totalorder %s192, %s194
      %p201 = scmp.eq.s32.totalorder %s32, 1
      %p202 = por %p200, %p201
      %p203 = scmp.ne.s32.totalorder %s194, %s195
      %p204 = scmp.eq.s32.totalorder %s32, 0
      %p205 = por %p203, %p204
      %p206 = scmp.ne.s32.totalorder %s194, %s195
      %p207 = scmp.eq.s32.totalorder %s33, 1
      %p208 = por %p206, %p207
      %p210 = scmp.ne.s32.totalorder %s195, %s209
      %p211 = scmp.eq.s32.totalorder %s33, 0
      %p212 = por %p210, %p211
      %s214 = sadd.s32 %s213, 1
      %p217 = scmp.eq.s32.totalorder %s27, 1
      %p218 = scmp.ne.s32.totalorder %s213, %s215
      %p219 = scmp.eq.s32.totalorder %s27, 0
      %p220 = por %p218, %p219
      %p221 = scmp.ne.s32.totalorder %s213, %s215
      %p222 = scmp.eq.s32.totalorder %s32, 1
      %p223 = por %p221, %p222
      %p224 = scmp.ne.s32.totalorder %s215, %s216
      %p225 = scmp.eq.s32.totalorder %s32, 0
      %p226 = por %p224, %p225
      %p227 = scmp.ne.s32.totalorder %s215, %s216
      %p228 = scmp.eq.s32.totalorder %s33, 1
      %p229 = por %p227, %p228
      %p231 = scmp.ne.s32.totalorder %s216, %s230
      %p232 = scmp.eq.s32.totalorder %s33, 0
      %p233 = por %p231, %p232
      %s235 = sadd.s32 %s234, 1
      %p238 = scmp.eq.s32.totalorder %s27, 1
      %p239 = scmp.ne.s32.totalorder %s234, %s236
      %p240 = scmp.eq.s32.totalorder %s27, 0
      %p241 = por %p239, %p240
      %p242 = scmp.ne.s32.totalorder %s234, %s236
      %p243 = scmp.eq.s32.totalorder %s32, 1
      %p244 = por %p242, %p243
      %p245 = scmp.ne.s32.totalorder %s236, %s237
      %p246 = scmp.eq.s32.totalorder %s32, 0
      %p247 = por %p245, %p246
      %p248 = scmp.ne.s32.totalorder %s236, %s237
      %p249 = scmp.eq.s32.totalorder %s33, 1
      %p250 = por %p248, %p249
      %p252 = scmp.ne.s32.totalorder %s237, %s251
      %p253 = scmp.eq.s32.totalorder %s33, 0
      %p254 = por %p252, %p253
      %s256 = sadd.s32 %s255, 1
      %p259 = scmp.eq.s32.totalorder %s27, 1
      %p260 = scmp.ne.s32.totalorder %s255, %s257
      %p261 = scmp.eq.s32.totalorder %s27, 0
      %p262 = por %p260, %p261
      %p263 = scmp.ne.s32.totalorder %s255, %s257
      %p264 = scmp.eq.s32.totalorder %s32, 1
      %p265 = por %p263, %p264
      %p266 = scmp.ne.s32.totalorder %s257, %s258
      %p267 = scmp.eq.s32.totalorder %s32, 0
      %p268 = por %p266, %p267
      %p269 = scmp.ne.s32.totalorder %s257, %s258
      %p270 = scmp.eq.s32.totalorder %s33, 1
      %p271 = por %p269, %p270
      %p273 = scmp.ne.s32.totalorder %s258, %s272
      %p274 = scmp.eq.s32.totalorder %s33, 0
      %p275 = por %p273, %p274
      %s277 = sadd.s32 %s276, 1
      %p280 = scmp.eq.s32.totalorder %s27, 1
      %p281 = scmp.ne.s32.totalorder %s276, %s278
      %p282 = scmp.eq.s32.totalorder %s27, 0
      %p283 = por %p281, %p282
      %p284 = scmp.ne.s32.totalorder %s276, %s278
      %p285 = scmp.eq.s32.totalorder %s32, 1
      %p286 = por %p284, %p285
      %p287 = scmp.ne.s32.totalorder %s278, %s279
      %p288 = scmp.eq.s32.totalorder %s32, 0
      %p289 = por %p287, %p288
      %p290 = scmp.ne.s32.totalorder %s278, %s279
      %p291 = scmp.eq.s32.totalorder %s33, 1
      %p292 = por %p290, %p291
      %p294 = scmp.ne.s32.totalorder %s279, %s293
      %p295 = scmp.eq.s32.totalorder %s33, 0
      %p296 = por %p294, %p295
      %s298 = sadd.s32 %s297, 1
      %p301 = scmp.eq.s32.totalorder %s27, 1
      %p302 = scmp.ne.s32.totalorder %s297, %s299
      %p303 = scmp.eq.s32.totalorder %s27, 0
      %p304 = por %p302, %p303
      %p305 = scmp.ne.s32.totalorder %s297, %s299
      %p306 = scmp.eq.s32.totalorder %s32, 1
      %p307 = por %p305, %p306
      %p308 = scmp.ne.s32.totalorder %s299, %s300
      %p309 = scmp.eq.s32.totalorder %s32, 0
      %p310 = por %p308, %p309
      %p311 = scmp.ne.s32.totalorder %s299, %s300
      %p312 = scmp.eq.s32.totalorder %s33, 1
      %p313 = por %p311, %p312
      %p315 = scmp.ne.s32.totalorder %s300, %s314
      %p316 = scmp.eq.s32.totalorder %s33, 0
      %p317 = por %p315, %p316
      %s319 = sadd.s32 %s318, 1
      %p322 = scmp.eq.s32.totalorder %s27, 1
      %p323 = scmp.ne.s32.totalorder %s318, %s320
      %p324 = scmp.eq.s32.totalorder %s27, 0
      %p325 = por %p323, %p324
      %p326 = scmp.ne.s32.totalorder %s318, %s320
      %p327 = scmp.eq.s32.totalorder %s32, 1
      %p328 = por %p326, %p327
      %p329 = scmp.ne.s32.totalorder %s320, %s321
      %p330 = scmp.eq.s32.totalorder %s32, 0
      %p331 = por %p329, %p330
      %p332 = scmp.ne.s32.totalorder %s320, %s321
      %p333 = scmp.eq.s32.totalorder %s33, 1
      %p334 = por %p332, %p333
      %p336 = scmp.ne.s32.totalorder %s321, %s335
      %p337 = scmp.eq.s32.totalorder %s33, 0
      %p338 = por %p336, %p337
      %s339 = ssub.s32 %s27, %s34
      %p340 = scmp.eq.s32.totalorder %s339, 0
      %s342 = sadd.s32 %s341, 1
      %s343 = scalar_select %p340, %s341, %s342
      %p346 = pneg %p340
      %p347 = scmp.eq.s32.totalorder %s27, 1
      %p348 = por %p346, %p347
      %p349 = scmp.ne.s32.totalorder %s341, %s344
      %p350 = scmp.eq.s32.totalorder %s27, 0
      %p351 = por %p349, %p350
      %p352 = scmp.ne.s32.totalorder %s341, %s344
      %p353 = scmp.eq.s32.totalorder %s32, 1
      %p354 = por %p352, %p353
      %p355 = scmp.ne.s32.totalorder %s344, %s345
      %p356 = scmp.eq.s32.totalorder %s32, 0
      %p357 = por %p355, %p356
      %p358 = scmp.ne.s32.totalorder %s344, %s345
      %p359 = scmp.eq.s32.totalorder %s33, 1
      %p360 = por %p358, %p359
      %p362 = scmp.ne.s32.totalorder %s345, %s361
      %p363 = scmp.eq.s32.totalorder %s33, 0
      %p364 = por %p362, %p363
      %p365 = scmp.le.s32.totalorder 1, %s27
      %p366 = scmp.lt.s32.totalorder %s27, 3
      %p367 = pnand %p365, %p366
      %p368 = pneg %p367
      // Predicated region
      $region9: #{tpu_custom_call.1} parent=5 // pred_check
        _
      $region10: #{tpu_custom_call.1} parent=5 // pred_check_branch
        %370 = sbr.rel (%p367) target = $region12
      $region11: #{tpu_custom_call.1} parent=5 // pred_region
        %s371 = ssub.s32 %s27, 1
        // Predicated region
        $region13: #{tpu_custom_call.1} parent=11 // pred_check
          %p372 = pneg %p100
        $region14: #{tpu_custom_call.1} parent=11 // pred_check_branch
          %374 = sbr.rel (%p372) target = $region16
        $region15: #{tpu_custom_call.1} parent=11 // pred_region
          %s376 = ssub.s32 256, 256
          %377 = vsyncadd [#allocation3], %s376
          %s378 = sshll.u32 [#allocation2], 4
          %s379 = int_to_ptr.vmem [resolvable:$true] %s378
          %384 = dma.hbm_to_vmem [thread:$0]  %s2, 256, %s379, [#allocation3], 128, 128, 8
        $region16: #{tpu_custom_call.1} parent=11 // pred_fallthru
          _
        // Predicated region
        $region17: #{tpu_custom_call.1} parent=11 // pred_check
          %p385 = pneg %p121
        $region18: #{tpu_custom_call.1} parent=11 // pred_check_branch
          %387 = sbr.rel (%p385) target = $region20
        $region19: #{tpu_custom_call.1} parent=11 // pred_region
          _
        $region20: #{tpu_custom_call.1} parent=11 // pred_fallthru
          _
        // Predicated region
        $region21: #{tpu_custom_call.1} parent=11 // pred_check
          %p388 = pneg %p142
        $region22: #{tpu_custom_call.1} parent=11 // pred_check_branch
          %390 = sbr.rel (%p388) target = $region24
        $region23: #{tpu_custom_call.1} parent=11 // pred_region
          %s392 = ssub.s32 2048, 2048
          %393 = vsyncadd [#allocation6], %s392
          %s394 = sshll.u32 [#allocation5], 4
          %s395 = int_to_ptr.vmem [resolvable:$true] %s394
          %400 = dma.hbm_to_vmem [thread:$0]  %s4, 2048, %s395, [#allocation6], 128, 128, 8
        $region24: #{tpu_custom_call.1} parent=11 // pred_fallthru
          _
        // Predicated region
        $region25: #{tpu_custom_call.1} parent=11 // pred_check
          %p401 = pneg %p163
        $region26: #{tpu_custom_call.1} parent=11 // pred_check_branch
          %403 = sbr.rel (%p401) target = $region28
        $region27: #{tpu_custom_call.1} parent=11 // pred_region
          _
        $region28: #{tpu_custom_call.1} parent=11 // pred_fallthru
          _
        // Predicated region
        $region29: #{tpu_custom_call.1} parent=11 // pred_check
          %p404 = pneg %p184
        $region30: #{tpu_custom_call.1} parent=11 // pred_check_branch
          %406 = sbr.rel (%p404) target = $region32
        $region31: #{tpu_custom_call.1} parent=11 // pred_region
          %s408 = ssub.s32 2048, 2048
          %409 = vsyncadd [#allocation6], %s408
          %s410 = sshll.u32 [#allocation7], 4
          %s411 = int_to_ptr.vmem [resolvable:$true] %s410
          %416 = dma.hbm_to_vmem [thread:$0]  %s6, 2048, %s411, [#allocation6], 128, 128, 8
        $region32: #{tpu_custom_call.1} parent=11 // pred_fallthru
          _
        // Predicated region
        $region33: #{tpu_custom_call.1} parent=11 // pred_check
          %p417 = pneg %p205
        $region34: #{tpu_custom_call.1} parent=11 // pred_check_branch
          %419 = sbr.rel (%p417) target = $region36
        $region35: #{tpu_custom_call.1} parent=11 // pred_region
          _
        $region36: #{tpu_custom_call.1} parent=11 // pred_fallthru
          _
        // Predicated region
        $region37: #{tpu_custom_call.1} parent=11 // pred_check
          %p420 = pneg %p226
        $region38: #{tpu_custom_call.1} parent=11 // pred_check_branch
          %422 = sbr.rel (%p420) target = $region40
        $region39: #{tpu_custom_call.1} parent=11 // pred_region
          %s424 = ssub.s32 2048, 2048
          %425 = vsyncadd [#allocation9], %s424
          %s426 = sshll.u32 [#allocation8], 4
          %s427 = int_to_ptr.vmem [resolvable:$true] %s426
          %432 = dma.hbm_to_vmem [thread:$0]  %s8, 2048, %s427, [#allocation9], 128, 128, 8
        $region40: #{tpu_custom_call.1} parent=11 // pred_fallthru
          _
        // Predicated region
        $region41: #{tpu_custom_call.1} parent=11 // pred_check
          %p433 = pneg %p247
        $region42: #{tpu_custom_call.1} parent=11 // pred_check_branch
          %435 = sbr.rel (%p433) target = $region44
        $region43: #{tpu_custom_call.1} parent=11 // pred_region
          _
        $region44: #{tpu_custom_call.1} parent=11 // pred_fallthru
          _
        // Predicated region
        $region45: #{tpu_custom_call.1} parent=11 // pred_check
          %p436 = pneg %p268
        $region46: #{tpu_custom_call.1} parent=11 // pred_check_branch
          %438 = sbr.rel (%p436) target = $region48
        $region47: #{tpu_custom_call.1} parent=11 // pred_region
          %s440 = ssub.s32 2048, 2048
          %441 = vsyncadd [#allocation9], %s440
          %s442 = sshll.u32 [#allocation10], 4
          %s443 = int_to_ptr.vmem [resolvable:$true] %s442
          %448 = dma.hbm_to_vmem [thread:$0]  %s10, 2048, %s443, [#allocation9], 128, 128, 8
        $region48: #{tpu_custom_call.1} parent=11 // pred_fallthru
          _
        // Predicated region
        $region49: #{tpu_custom_call.1} parent=11 // pred_check
          %p449 = pneg %p289
        $region50: #{tpu_custom_call.1} parent=11 // pred_check_branch
          %451 = sbr.rel (%p449) target = $region52
        $region51: #{tpu_custom_call.1} parent=11 // pred_region
          _
        $region52: #{tpu_custom_call.1} parent=11 // pred_fallthru
          _
        // Predicated region
        $region53: #{tpu_custom_call.1} parent=11 // pred_check
          %p452 = pneg %p310
        $region54: #{tpu_custom_call.1} parent=11 // pred_check_branch
          %454 = sbr.rel (%p452) target = $region56
        $region55: #{tpu_custom_call.1} parent=11 // pred_region
          %s456 = ssub.s32 2048, 2048
          %457 = vsyncadd [#allocation12], %s456
          %s458 = sshll.u32 [#allocation11], 4
          %s459 = int_to_ptr.vmem [resolvable:$true] %s458
          %464 = dma.hbm_to_vmem [thread:$0]  %s12, 2048, %s459, [#allocation12], 128, 128, 8
        $region56: #{tpu_custom_call.1} parent=11 // pred_fallthru
          _
        // Predicated region
        $region57: #{tpu_custom_call.1} parent=11 // pred_check
          %p465 = pneg %p331
        $region58: #{tpu_custom_call.1} parent=11 // pred_check_branch
          %467 = sbr.rel (%p465) target = $region60
        $region59: #{tpu_custom_call.1} parent=11 // pred_region
          _
        $region60: #{tpu_custom_call.1} parent=11 // pred_fallthru
          _
      $region12: #{tpu_custom_call.1} parent=5 // pred_fallthru
        _
      %p468 = scmp.lt.s32.totalorder %s27, 2
      // Predicated region
      $region61: #{tpu_custom_call.1} parent=5 // pred_check
        %p469 = pneg %p468
      $region62: #{tpu_custom_call.1} parent=5 // pred_check_branch
        %471 = sbr.rel (%p469) target = $region64
      $region63: #{tpu_custom_call.1} parent=5 // pred_region
        // Predicated region
        $region65: #{tpu_custom_call.1} parent=63 // pred_check
          %p472 = pneg %p47
        $region66: #{tpu_custom_call.1} parent=63 // pred_check_branch
          %474 = sbr.rel (%p472) target = $region68
        $region67: #{tpu_custom_call.1} parent=63 // pred_region
          %p475 = scmp.lt.s32.totalorder %s27, 1
          %s476 = scalar_select %p475, %s27, 1
          %s477 = smul.addr %s476, 8
          %s478 = scalar_lea.vmem %s0, %s477
        $region68: #{tpu_custom_call.1} parent=63 // pred_fallthru
          _
        // Predicated region
        $region69: #{tpu_custom_call.1} parent=63 // pred_check
          %p479 = pneg %p73
        $region70: #{tpu_custom_call.1} parent=63 // pred_check_branch
          %481 = sbr.rel (%p479) target = $region72
        $region71: #{tpu_custom_call.1} parent=63 // pred_region
          %p482 = scmp.lt.s32.totalorder %s27, 1
          %s483 = scalar_select %p482, %s27, 1
          %s484 = smul.addr %s483, 8
          %s485 = scalar_lea.vmem %s1, %s484
        $region72: #{tpu_custom_call.1} parent=63 // pred_fallthru
          _
      $region64: #{tpu_custom_call.1} parent=5 // pred_fallthru
        _
      %p486 = scmp.le.s32.totalorder 1, %s27
      %p487 = scmp.lt.s32.totalorder %s27, 3
      %p488 = pnand %p486, %p487
      %p489 = pneg %p488
      // Predicated region
      $region73: #{tpu_custom_call.1} parent=5 // pred_check
        _
      $region74: #{tpu_custom_call.1} parent=5 // pred_check_branch
        %491 = sbr.rel (%p488) target = $region76
      $region75: #{tpu_custom_call.1} parent=5 // pred_region
        %s492 = ssub.s32 %s27, 1
        // Predicated region
        $region77: #{tpu_custom_call.1} parent=75 // pred_check
          %p493 = pneg %p100
        $region78: #{tpu_custom_call.1} parent=75 // pred_check_branch
          %495 = sbr.rel (%p493) target = $region80
        $region79: #{tpu_custom_call.1} parent=75 // pred_region
          %496 = dma.done [#allocation3], 256
        $region80: #{tpu_custom_call.1} parent=75 // pred_fallthru
          _
        // Predicated region
        $region81: #{tpu_custom_call.1} parent=75 // pred_check
          %p497 = pneg %p142
        $region82: #{tpu_custom_call.1} parent=75 // pred_check_branch
          %499 = sbr.rel (%p497) target = $region84
        $region83: #{tpu_custom_call.1} parent=75 // pred_region
          %500 = dma.done [#allocation6], 2048
        $region84: #{tpu_custom_call.1} parent=75 // pred_fallthru
          _
        // Predicated region
        $region85: #{tpu_custom_call.1} parent=75 // pred_check
          %p501 = pneg %p184
        $region86: #{tpu_custom_call.1} parent=75 // pred_check_branch
          %503 = sbr.rel (%p501) target = $region88
        $region87: #{tpu_custom_call.1} parent=75 // pred_region
          %504 = dma.done [#allocation6], 2048
        $region88: #{tpu_custom_call.1} parent=75 // pred_fallthru
          _
        // Predicated region
        $region89: #{tpu_custom_call.1} parent=75 // pred_check
          %p505 = pneg %p226
        $region90: #{tpu_custom_call.1} parent=75 // pred_check_branch
          %507 = sbr.rel (%p505) target = $region92
        $region91: #{tpu_custom_call.1} parent=75 // pred_region
          %508 = dma.done [#allocation9], 2048
        $region92: #{tpu_custom_call.1} parent=75 // pred_fallthru
          _
        // Predicated region
        $region93: #{tpu_custom_call.1} parent=75 // pred_check
          %p509 = pneg %p268
        $region94: #{tpu_custom_call.1} parent=75 // pred_check_branch
          %511 = sbr.rel (%p509) target = $region96
        $region95: #{tpu_custom_call.1} parent=75 // pred_region
          %512 = dma.done [#allocation9], 2048
        $region96: #{tpu_custom_call.1} parent=75 // pred_fallthru
          _
        // Predicated region
        $region97: #{tpu_custom_call.1} parent=75 // pred_check
          %p513 = pneg %p310
        $region98: #{tpu_custom_call.1} parent=75 // pred_check_branch
          %515 = sbr.rel (%p513) target = $region100
        $region99: #{tpu_custom_call.1} parent=75 // pred_region
          %516 = dma.done [#allocation12], 2048
        $region100: #{tpu_custom_call.1} parent=75 // pred_fallthru
          _
        %p517 = scmp.lt.s32.totalorder %s32, 1
        %s518 = scalar_select %p517, %s32, 1
        %s519 = smul.addr %s518, 8
        %s520 = scalar_lea.vmem %s0, %s519
        %p521 = pneg %p53
        %p522 = pneg %p50
        %p523 = scmp.lt.s32.totalorder %s32, 1
        %s524 = scalar_select %p523, %s32, 1
        %s525 = smul.addr %s524, 8
        %s526 = scalar_lea.vmem %s1, %s525
        %p527 = pneg %p79
        %p528 = pneg %p76
        %p529 = pneg %p100
        %p530 = pneg %p97
        %p531 = pneg %p121
        %p532 = pneg %p118
        %p533 = pneg %p142
        %p534 = pneg %p139
        %p535 = pneg %p163
        %p536 = pneg %p160
        %p537 = pneg %p184
        %p538 = pneg %p181
        %p539 = pneg %p205
        %p540 = pneg %p202
        %p541 = pneg %p226
        %p542 = pneg %p223
        %p543 = pneg %p247
        %p544 = pneg %p244
        %p545 = pneg %p268
        %p546 = pneg %p265
        %p547 = pneg %p289
        %p548 = pneg %p286
        %p549 = pneg %p310
        %p550 = pneg %p307
        %p551 = pneg %p331
        %p552 = pneg %p328
        %p553 = pneg %p357
        %p554 = pneg %p354
        %s555 = sand.u32 %s344, 1
        %s556 = scalar_lea.sflag [#allocation4], %s555
        %s557 = sand.u32 %s344, 1
        %s558 = smul.addr %s557, 8
        %s559 = scalar_lea.vmem [#allocation13], %s558
        %p560 = scmp.lt.s32.totalorder %s32, 1
        %s561 = scalar_select %p560, %s32, 1
        %s562 = smul.addr %s561, 8
        %s563 = scalar_lea.vmem %s0, %s562
        %p564 = scmp.lt.s32.totalorder %s32, 1
        %s565 = scalar_select %p564, %s32, 1
        %s566 = smul.addr %s565, 8
        %s567 = scalar_lea.vmem %s1, %s566
        %v568 = vlaneseq
        %v569 = vand.u32 %v568, 127
        %v570 = vcvt.s32.f32 %v569
        %v571 = vmul.f32 %v570, -1.1512926
        %v572 = vmul.f32 %v571, 1.442695
        %v573 = vpow.pop %v572
        %v574 = vld [vmem:[%s567] sm:$0xff]
        %576 = vset.pattern.permute.xlu0 0
        %577 = vperm.xlu0 %576, %v574
        %v578 = vpop.permute.xlu0 %577
        %v580 = vmul.f32 %v578, %v573
        %v581 = vand.u32 2147483647, %v580
        %vm582 = vcmp.le.f32.partialorder %v581, 0.7853982
        %vm583 = vcmp.lt.s32.totalorder %v580, 0
        %v584 = vand.u32 %v580, 2139095040
        %v585 = vshrl.u32 %v584, 23
        %v586 = vsub.s32 %v585, 127
        %v587 = vand.u32 2147483647, %v580
        %v588 = vand.u32 %v587, 8388607
        %v589 = vor.u32 %v588, 8388608
        %v590 = vsub.s32 0, %v589
        %v591 = vadd.s32 %v586, 1
        %vm592 = vcmp.gt.s32.totalorder %v591, 0
        %v593 = vsel %vm592, %v591, 0
        %v594 = vshrl.u32 %v593, 5
        %v595 = vand.u32 %v593, 31
        %v596 = vsub.s32 32, %v595
        %v597 = vshrl.u32 683565275, %v596
        %v598 = vshll.u32 683565275, %v595
        %v599 = vshrl.u32 2475754826, %v596
        %v600 = vor.u32 %v598, %v599
        %v601 = vshll.u32 2475754826, %v595
        %v602 = vshrl.u32 2131351028, %v596
        %v603 = vor.u32 %v601, %v602
        %v604 = vshll.u32 2131351028, %v595
        %v605 = vshrl.u32 2102212464, %v596
        %v606 = vor.u32 %v604, %v605
        %v607 = vshll.u32 2102212464, %v595
        %v608 = vshrl.u32 920167782, %v596
        %v609 = vor.u32 %v607, %v608
        %v610 = vshll.u32 920167782, %v595
        %v611 = vshrl.u32 1326507024, %v596
        %v612 = vor.u32 %v610, %v611
        %vm613 = vcmp.lt.s32.totalorder %v594, 1
        %vm614 = vcmp.lt.s32.totalorder %v594, 2
        %vm615 = vcmp.lt.s32.totalorder %v594, 3
        %vm616 = vcmp.lt.s32.totalorder %v594, 4
        %v617 = vsel %vm613, %v597, %v600
        %v618 = vsel %vm616, %v606, 2102212464
        %v619 = vsel %vm615, %v603, %v618
        %v620 = vsel %vm614, %v617, %v619
        %v621 = vsel %vm613, %v600, %v603
        %v622 = vsel %vm616, %v609, 920167782
        %v623 = vsel %vm615, %v606, %v622
        %v624 = vsel %vm614, %v621, %v623
        %v625 = vsel %vm613, %v603, %v606
        %v626 = vsel %vm616, %v612, 1326507024
        %v627 = vsel %vm615, %v609, %v626
        %v628 = vsel %vm614, %v625, %v627
        %v629 = vshll.u32 %v589, 8
        %v630 = vmul.u32.u64.compose %v629, %v628
        %v631 = vextract.low.u32 %v630
        %v632 = vextract.high.u32 %v630
        %v633 = vmul.u32.u64.compose %v629, %v624
        %v634 = vextract.low.u32 %v633
        %v635 = vextract.high.u32 %v633
        %v636 = vmul.u32 %v629, %v620
        %v637 = vadd.s32 %v632, %v634
        %vm638 = vc.u32 %v632, %v634
        %v639 = vadd.s32 %v635, 1
        %v640 = vsel %vm638, %v639, %v635
        %v641 = vadd.s32 %v636, %v640
        %v642 = vadd.s32 %v641, 536870912
        %v643 = vshrl.u32 %v642, 30
        %v644 = vshll.u32 %v643, 30
        %v645 = vsub.s32 %v641, %v644
        %vm646 = vcmp.lt.s32.totalorder %v645, 0
        %v647 = vsub.s32 0, %v645
        %v648 = vsel %vm646, %v647, %v645
        %v649 = vclz %v648
        %v650 = vsub.s32 %v649, 2
        %vm651 = vcmp.gt.s32.totalorder 0, %v650
        %v652 = vsel %vm651, 0, %v650
        %v653 = vsub.s32 32, %v652
        %v654 = vshll.u32 %v645, %v652
        %v655 = vshrl.u32 %v637, %v653
        %v656 = vor.u32 %v654, %v655
        %v657 = vsub.s32 4294967266, %v652
        %v658 = vadd.s32 %v657, 127
        %v659 = vshll.u32 %v658, 23
        %v660 = vor.u32 4788187, %v659
        %v661 = vand.u32 2147483647, %v660
        %v663 = vcvt.s32.f32 %v656
        %v664 = vmul.f32 %v663, %v661
        %v665 = vxor.u32 %v664, 2147483648
        %v666 = vsel %vm583, %v665, %v664
        %v667 = vsub.s32 4, %v643
        %v668 = vsel %vm583, %v667, %v643
        %v669 = vsel %vm582, %v580, %v666
        %v670 = vsel %vm582, 0, %v668
        %v671 = vcosq.f32.pop %v669
        %v672 = vsinq.f32.pop %v669
        %vm673 = vweird.f32 %v580
        %v674 = vadd.s32 %v670, 3
        %v675 = vand.u32 %v674, 3
        %vm676 = vcmp.lt.s32.totalorder %v675, 2
        %vm677 = vcmp.eq.s32.totalorder %v675, 0
        %v678 = vxor.u32 %v672, 2147483648
        %v679 = vsel %vm677, %v671, %v678
        %vm680 = vcmp.eq.s32.totalorder %v675, 2
        %v681 = vxor.u32 %v671, 2147483648
        %v682 = vsel %vm680, %v681, %v672
        %v683 = vsel %vm676, %v679, %v682
        %v684 = vsel %vm673, nan, %v683
        %v685 = vand.u32 2147483647, %v580
        %vm686 = vcmp.le.f32.partialorder %v685, 0.7853982
        %vm687 = vcmp.lt.s32.totalorder %v580, 0
        %v688 = vand.u32 %v580, 2139095040
        %v689 = vshrl.u32 %v688, 23
        %v690 = vsub.s32 %v689, 127
        %v691 = vand.u32 2147483647, %v580
        %v692 = vand.u32 %v691, 8388607
        %v693 = vor.u32 %v692, 8388608
        %v694 = vsub.s32 0, %v693
        %v695 = vadd.s32 %v690, 1
        %vm696 = vcmp.gt.s32.totalorder %v695, 0
        %v697 = vsel %vm696, %v695, 0
        %v698 = vshrl.u32 %v697, 5
        %v699 = vand.u32 %v697, 31
        %v700 = vsub.s32 32, %v699
        %v701 = vshrl.u32 683565275, %v700
        %v702 = vshll.u32 683565275, %v699
        %v703 = vshrl.u32 2475754826, %v700
        %v704 = vor.u32 %v702, %v703
        %v705 = vshll.u32 2475754826, %v699
        %v706 = vshrl.u32 2131351028, %v700
        %v707 = vor.u32 %v705, %v706
        %v708 = vshll.u32 2131351028, %v699
        %v709 = vshrl.u32 2102212464, %v700
        %v710 = vor.u32 %v708, %v709
        %v711 = vshll.u32 2102212464, %v699
        %v712 = vshrl.u32 920167782, %v700
        %v713 = vor.u32 %v711, %v712
        %v714 = vshll.u32 920167782, %v699
        %v715 = vshrl.u32 1326507024, %v700
        %v716 = vor.u32 %v714, %v715
        %vm717 = vcmp.lt.s32.totalorder %v698, 1
        %vm718 = vcmp.lt.s32.totalorder %v698, 2
        %vm719 = vcmp.lt.s32.totalorder %v698, 3
        %vm720 = vcmp.lt.s32.totalorder %v698, 4
        %v721 = vsel %vm717, %v701, %v704
        %v722 = vsel %vm720, %v710, 2102212464
        %v723 = vsel %vm719, %v707, %v722
        %v724 = vsel %vm718, %v721, %v723
        %v725 = vsel %vm717, %v704, %v707
        %v726 = vsel %vm720, %v713, 920167782
        %v727 = vsel %vm719, %v710, %v726
        %v728 = vsel %vm718, %v725, %v727
        %v729 = vsel %vm717, %v707, %v710
        %v730 = vsel %vm720, %v716, 1326507024
        %v731 = vsel %vm719, %v713, %v730
        %v732 = vsel %vm718, %v729, %v731
        %v733 = vshll.u32 %v693, 8
        %v734 = vmul.u32.u64.compose %v733, %v732
        %v735 = vextract.low.u32 %v734
        %v736 = vextract.high.u32 %v734
        %v737 = vmul.u32.u64.compose %v733, %v728
        %v738 = vextract.low.u32 %v737
        %v739 = vextract.high.u32 %v737
        %v740 = vmul.u32 %v733, %v724
        %v741 = vadd.s32 %v736, %v738
        %vm742 = vc.u32 %v736, %v738
        %v743 = vadd.s32 %v739, 1
        %v744 = vsel %vm742, %v743, %v739
        %v745 = vadd.s32 %v740, %v744
        %v746 = vadd.s32 %v745, 536870912
        %v747 = vshrl.u32 %v746, 30
        %v748 = vshll.u32 %v747, 30
        %v749 = vsub.s32 %v745, %v748
        %vm750 = vcmp.lt.s32.totalorder %v749, 0
        %v751 = vsub.s32 0, %v749
        %v752 = vsel %vm750, %v751, %v749
        %v753 = vclz %v752
        %v754 = vsub.s32 %v753, 2
        %vm755 = vcmp.gt.s32.totalorder 0, %v754
        %v756 = vsel %vm755, 0, %v754
        %v757 = vsub.s32 32, %v756
        %v758 = vshll.u32 %v749, %v756
        %v759 = vshrl.u32 %v741, %v757
        %v760 = vor.u32 %v758, %v759
        %v761 = vsub.s32 4294967266, %v756
        %v762 = vadd.s32 %v761, 127
        %v763 = vshll.u32 %v762, 23
        %v764 = vor.u32 4788187, %v763
        %v765 = vand.u32 2147483647, %v764
        %v767 = vcvt.s32.f32 %v760
        %v768 = vmul.f32 %v767, %v765
        %v769 = vxor.u32 %v768, 2147483648
        %v770 = vsel %vm687, %v769, %v768
        %v771 = vsub.s32 4, %v747
        %v772 = vsel %vm687, %v771, %v747
        %v773 = vsel %vm686, %v580, %v770
        %v774 = vsel %vm686, 0, %v772
        %v775 = vcosq.f32.pop %v773
        %v776 = vsinq.f32.pop %v773
        %vm777 = vweird.f32 %v580
        %v778 = vand.u32 %v774, 3
        %vm779 = vcmp.lt.s32.totalorder %v778, 2
        %vm780 = vcmp.eq.s32.totalorder %v778, 0
        %v781 = vxor.u32 %v776, 2147483648
        %v782 = vsel %vm780, %v775, %v781
        %vm783 = vcmp.eq.s32.totalorder %v778, 2
        %v784 = vxor.u32 %v775, 2147483648
        %v785 = vsel %vm783, %v784, %v776
        %v786 = vsel %vm779, %v782, %v785
        %v787 = vsel %vm777, nan, %v786
        %v788 = vld [vmem:[#allocation2] sm:$0xff]
        %v789 = vld [vmem:[#allocation2 + $0x8] sm:$0xff]
        %vm790 = vcmask 64512
        %v792 = vsel %vm790, %v787, 0
        %794 = vmatprep.subr.mxu0 0.0
        %795 = vmatpush1.msra.mxu0 %v789
        %796 = vmatprep.subr.mxu0 0.0
        %797 = vmatpush1.msra.mxu0 0.0
        %798 = vmatprep.subr.mxu0 0.0
        %799 = vmatpush1.msra.mxu0 0.0
        %800 = vmatprep.subr.mxu0 0.0
        %801 = vmatpush1.msra.mxu0 0.0
        %802 = vmatprep.subr.mxu0 0.0
        %803 = vmatpush1.msra.mxu0 0.0
        %804 = vmatprep.subr.mxu0 0.0
        %805 = vmatpush1.msra.mxu0 0.0
        %806 = vmatprep.subr.mxu0 0.0
        %807 = vmatpush1.msra.mxu0 0.0
        %808 = vmatprep.subr.mxu0 0.0
        %809 = vmatpush1.msra.mxu0 0.0
        %810 = vmatprep.subr.mxu0 0.0
        %811 = vmatpush1.msra.mxu0 0.0
        %812 = vmatprep.subr.mxu0 0.0
        %813 = vmatpush1.msra.mxu0 0.0
        %814 = vmatprep.subr.mxu0 0.0
        %815 = vmatpush1.msra.mxu0 0.0
        %816 = vmatprep.subr.mxu0 0.0
        %817 = vmatpush1.msra.mxu0 0.0
        %818 = vmatprep.subr.mxu0 0.0
        %819 = vmatpush1.msra.mxu0 0.0
        %820 = vmatprep.subr.mxu0 0.0
        %821 = vmatpush1.msra.mxu0 0.0
        %822 = vmatprep.subr.mxu0 0.0
        %823 = vmatpush1.msra.mxu0 0.0
        %824 = vmatprep.subr.mxu0 0.0
        %825 = vmatpush1.msra.mxu0 0.0
        %826 = vmatprep.subr.mxu0 0.0
        %827 = vmatpush1.msra.mxu0 0.0
        %828 = vmatprep.subr.mxu0 0.0
        %829 = vmatpush1.msra.mxu0 0.0
        %830 = vmatprep.subr.mxu0 0.0
        %831 = vmatpush1.msra.mxu0 0.0
        %832 = vmatprep.subr.mxu0 0.0
        %833 = vmatpush1.msra.mxu0 0.0
        %834 = vmatprep.subr.mxu0 0.0
        %835 = vmatpush1.msra.mxu0 0.0
        %836 = vmatprep.subr.mxu0 0.0
        %837 = vmatpush1.msra.mxu0 0.0
        %838 = vmatprep.subr.mxu0 0.0
        %839 = vmatpush1.msra.mxu0 0.0
        %840 = vmatprep.subr.mxu0 0.0
        %841 = vmatpush1.msra.mxu0 0.0
        %842 = vmatprep.subr.mxu0 0.0
        %843 = vmatpush1.msra.mxu0 0.0
        %844 = vmatprep.subr.mxu0 0.0
        %845 = vmatpush1.msra.mxu0 0.0
        %846 = vmatprep.subr.mxu0 0.0
        %847 = vmatpush1.msra.mxu0 0.0
        %848 = vmatprep.subr.mxu0 0.0
        %849 = vmatpush1.msra.mxu0 0.0
        %850 = vmatprep.subr.mxu0 0.0
        %851 = vmatpush1.msra.mxu0 0.0
        %852 = vmatprep.subr.mxu0 0.0
        %853 = vmatpush1.msra.mxu0 0.0
        %854 = vmatprep.subr.mxu0 0.0
        %855 = vmatpush1.msra.mxu0 0.0
        %856 = vmatprep.subr.mxu0 0.0
        %857 = vmatpush1.msra.mxu0 0.0
        %858 = vmatprep.mubr.f32.mxu0 0.0
        %859 = vmatmul.mubr.f32.gmra.mrb[0].mxu0 %v792
        %v860 = vpop.f32.mrb[0].mxu0
        %v861 = vadd.f32 0.0, %v860
        %v862 = vpop.f32.mrb[0].mxu0
        %863 = vdwg.mxu0
        %v865 = vsel %vm790, %v684, 0
        %867 = vmatprep.subr.mxu0 0.0
        %868 = vmatpush1.msra.mxu0 %v788
        %869 = vmatprep.subr.mxu0 0.0
        %870 = vmatpush1.msra.mxu0 0.0
        %871 = vmatprep.subr.mxu0 0.0
        %872 = vmatpush1.msra.mxu0 0.0
        %873 = vmatprep.subr.mxu0 0.0
        %874 = vmatpush1.msra.mxu0 0.0
        %875 = vmatprep.subr.mxu0 0.0
        %876 = vmatpush1.msra.mxu0 0.0
        %877 = vmatprep.subr.mxu0 0.0
        %878 = vmatpush1.msra.mxu0 0.0
        %879 = vmatprep.subr.mxu0 0.0
        %880 = vmatpush1.msra.mxu0 0.0
        %881 = vmatprep.subr.mxu0 0.0
        %882 = vmatpush1.msra.mxu0 0.0
        %883 = vmatprep.subr.mxu0 0.0
        %884 = vmatpush1.msra.mxu0 0.0
        %885 = vmatprep.subr.mxu0 0.0
        %886 = vmatpush1.msra.mxu0 0.0
        %887 = vmatprep.subr.mxu0 0.0
        %888 = vmatpush1.msra.mxu0 0.0
        %889 = vmatprep.subr.mxu0 0.0
        %890 = vmatpush1.msra.mxu0 0.0
        %891 = vmatprep.subr.mxu0 0.0
        %892 = vmatpush1.msra.mxu0 0.0
        %893 = vmatprep.subr.mxu0 0.0
        %894 = vmatpush1.msra.mxu0 0.0
        %895 = vmatprep.subr.mxu0 0.0
        %896 = vmatpush1.msra.mxu0 0.0
        %897 = vmatprep.subr.mxu0 0.0
        %898 = vmatpush1.msra.mxu0 0.0
        %899 = vmatprep.subr.mxu0 0.0
        %900 = vmatpush1.msra.mxu0 0.0
        %901 = vmatprep.subr.mxu0 0.0
        %902 = vmatpush1.msra.mxu0 0.0
        %903 = vmatprep.subr.mxu0 0.0
        %904 = vmatpush1.msra.mxu0 0.0
        %905 = vmatprep.subr.mxu0 0.0
        %906 = vmatpush1.msra.mxu0 0.0
        %907 = vmatprep.subr.mxu0 0.0
        %908 = vmatpush1.msra.mxu0 0.0
        %909 = vmatprep.subr.mxu0 0.0
        %910 = vmatpush1.msra.mxu0 0.0
        %911 = vmatprep.subr.mxu0 0.0
        %912 = vmatpush1.msra.mxu0 0.0
        %913 = vmatprep.subr.mxu0 0.0
        %914 = vmatpush1.msra.mxu0 0.0
        %915 = vmatprep.subr.mxu0 0.0
        %916 = vmatpush1.msra.mxu0 0.0
        %917 = vmatprep.subr.mxu0 0.0
        %918 = vmatpush1.msra.mxu0 0.0
        %919 = vmatprep.subr.mxu0 0.0
        %920 = vmatpush1.msra.mxu0 0.0
        %921 = vmatprep.subr.mxu0 0.0
        %922 = vmatpush1.msra.mxu0 0.0
        %923 = vmatprep.subr.mxu0 0.0
        %924 = vmatpush1.msra.mxu0 0.0
        %925 = vmatprep.subr.mxu0 0.0
        %926 = vmatpush1.msra.mxu0 0.0
        %927 = vmatprep.subr.mxu0 0.0
        %928 = vmatpush1.msra.mxu0 0.0
        %929 = vmatprep.subr.mxu0 0.0
        %930 = vmatpush1.msra.mxu0 0.0
        %931 = vmatprep.mubr.f32.mxu0 0.0
        %932 = vmatmul.mubr.f32.gmra.mrb[0].mxu0 %v865
        %v933 = vpop.f32.mrb[0].mxu0
        %v934 = vadd.f32 %v861, %v933
        %v935 = vpop.f32.mrb[0].mxu0
        %936 = vdwg.mxu0
        %v937 = vld [vmem:[%s3] sm:$0x1]
        %v939 = vlaneseq
        %v940 = vshrl.u32 %v939, 7
        %v941 = vsub.s32 0, %v940
        %v942 = vrot.slane %v937, %v941
        %v944 = vadd.f32 %v934, %v942
        %v945 = vld [vmem:[%s563] sm:$0xff]
        %v946 = vld [vmem:[#allocation5] sm:$0xff]
        %v947 = vld [vmem:[#allocation5 + $0x8] sm:$0xff]
        %v948 = vld [vmem:[#allocation5 + $0x10] sm:$0xff]
        %v949 = vld [vmem:[#allocation5 + $0x18] sm:$0xff]
        %v950 = vld [vmem:[#allocation5] sm:$0xff]
        %v951 = vld [vmem:[#allocation5 + $0x8] sm:$0xff]
        %v952 = vld [vmem:[#allocation5 + $0x10] sm:$0xff]
        %v953 = vld [vmem:[#allocation5 + $0x18] sm:$0xff]
        %v954 = vld [vmem:[#allocation5 + $0x20] sm:$0xff]
        %v955 = vld [vmem:[#allocation5 + $0x28] sm:$0xff]
        %v956 = vld [vmem:[#allocation5 + $0x30] sm:$0xff]
        %v957 = vld [vmem:[#allocation5 + $0x38] sm:$0xff]
        %v958 = vld [vmem:[#allocation5 + $0x40] sm:$0xff]
        %v959 = vld [vmem:[#allocation5 + $0x48] sm:$0xff]
        %v960 = vld [vmem:[#allocation5 + $0x50] sm:$0xff]
        %v961 = vld [vmem:[#allocation5 + $0x58] sm:$0xff]
        %v962 = vld [vmem:[#allocation5 + $0x60] sm:$0xff]
        %v963 = vld [vmem:[#allocation5 + $0x68] sm:$0xff]
        %v964 = vld [vmem:[#allocation5 + $0x70] sm:$0xff]
        %v965 = vld [vmem:[#allocation5 + $0x78] sm:$0xff]
        %966 = vmatprep.subr.mxu0 0.0
        %967 = vmatpush1.msra.mxu0 %v950
        %968 = vmatprep.subr.mxu0 0.0
        %969 = vmatpush1.msra.mxu0 %v951
        %970 = vmatprep.subr.mxu0 0.0
        %971 = vmatpush1.msra.mxu0 %v952
        %972 = vmatprep.subr.mxu0 0.0
        %973 = vmatpush1.msra.mxu0 %v953
        %974 = vmatprep.subr.mxu0 0.0
        %975 = vmatpush1.msra.mxu0 %v954
        %976 = vmatprep.subr.mxu0 0.0
        %977 = vmatpush1.msra.mxu0 %v955
        %978 = vmatprep.subr.mxu0 0.0
        %979 = vmatpush1.msra.mxu0 %v956
        %980 = vmatprep.subr.mxu0 0.0
        %981 = vmatpush1.msra.mxu0 %v957
        %982 = vmatprep.subr.mxu0 0.0
        %983 = vmatpush1.msra.mxu0 %v958
        %984 = vmatprep.subr.mxu0 0.0
        %985 = vmatpush1.msra.mxu0 %v959
        %986 = vmatprep.subr.mxu0 0.0
        %987 = vmatpush1.msra.mxu0 %v960
        %988 = vmatprep.subr.mxu0 0.0
        %989 = vmatpush1.msra.mxu0 %v961
        %990 = vmatprep.subr.mxu0 0.0
        %991 = vmatpush1.msra.mxu0 %v962
        %992 = vmatprep.subr.mxu0 0.0
        %993 = vmatpush1.msra.mxu0 %v963
        %994 = vmatprep.subr.mxu0 0.0
        %995 = vmatpush1.msra.mxu0 %v964
        %996 = vmatprep.subr.mxu0 0.0
        %997 = vmatpush1.msra.mxu0 %v965
        %998 = vmatprep.subr.mxu0 0.0
        %999 = vmatpush1.msra.mxu0 0.0
        %1000 = vmatprep.subr.mxu0 0.0
        %1001 = vmatpush1.msra.mxu0 0.0
        %1002 = vmatprep.subr.mxu0 0.0
        %1003 = vmatpush1.msra.mxu0 0.0
        %1004 = vmatprep.subr.mxu0 0.0
        %1005 = vmatpush1.msra.mxu0 0.0
        %1006 = vmatprep.subr.mxu0 0.0
        %1007 = vmatpush1.msra.mxu0 0.0
        %1008 = vmatprep.subr.mxu0 0.0
        %1009 = vmatpush1.msra.mxu0 0.0
        %1010 = vmatprep.subr.mxu0 0.0
        %1011 = vmatpush1.msra.mxu0 0.0
        %1012 = vmatprep.subr.mxu0 0.0
        %1013 = vmatpush1.msra.mxu0 0.0
        %1014 = vmatprep.subr.mxu0 0.0
        %1015 = vmatpush1.msra.mxu0 0.0
        %1016 = vmatprep.subr.mxu0 0.0
        %1017 = vmatpush1.msra.mxu0 0.0
        %1018 = vmatprep.subr.mxu0 0.0
        %1019 = vmatpush1.msra.mxu0 0.0
        %1020 = vmatprep.subr.mxu0 0.0
        %1021 = vmatpush1.msra.mxu0 0.0
        %1022 = vmatprep.subr.mxu0 0.0
        %1023 = vmatpush1.msra.mxu0 0.0
        %1024 = vmatprep.subr.mxu0 0.0
        %1025 = vmatpush1.msra.mxu0 0.0
        %1026 = vmatprep.subr.mxu0 0.0
        %1027 = vmatpush1.msra.mxu0 0.0
        %1028 = vmatprep.subr.mxu0 0.0
        %1029 = vmatpush1.msra.mxu0 0.0
        %1030 = vmatprep.mubr.f32.mxu0 0.0
        %1031 = vmatmul.mubr.f32.gmra.mrb[0].mxu0 %v944
        %v1032 = vpop.f32.mrb[0].mxu0
        %v1033 = vadd.f32 0.0, %v1032
        %v1034 = vpop.f32.mrb[0].mxu0
        %1035 = vdwg.mxu0
        %vm1036 = vcmask 261120
        %v1038 = vsel %vm1036, %v945, 0
        %1040 = vmatprep.subr.mxu0 0.0
        %1041 = vmatpush1.msra.mxu0 %v946
        %1042 = vmatprep.subr.mxu0 0.0
        %1043 = vmatpush1.msra.mxu0 %v947
        %1044 = vmatprep.subr.mxu0 0.0
        %1045 = vmatpush1.msra.mxu0 %v948
        %1046 = vmatprep.subr.mxu0 0.0
        %1047 = vmatpush1.msra.mxu0 %v949
        %1048 = vmatprep.subr.mxu0 0.0
        %1049 = vmatpush1.msra.mxu0 0.0
        %1050 = vmatprep.subr.mxu0 0.0
        %1051 = vmatpush1.msra.mxu0 0.0
        %1052 = vmatprep.subr.mxu0 0.0
        %1053 = vmatpush1.msra.mxu0 0.0
        %1054 = vmatprep.subr.mxu0 0.0
        %1055 = vmatpush1.msra.mxu0 0.0
        %1056 = vmatprep.subr.mxu0 0.0
        %1057 = vmatpush1.msra.mxu0 0.0
        %1058 = vmatprep.subr.mxu0 0.0
        %1059 = vmatpush1.msra.mxu0 0.0
        %1060 = vmatprep.subr.mxu0 0.0
        %1061 = vmatpush1.msra.mxu0 0.0
        %1062 = vmatprep.subr.mxu0 0.0
        %1063 = vmatpush1.msra.mxu0 0.0
        %1064 = vmatprep.subr.mxu0 0.0
        %1065 = vmatpush1.msra.mxu0 0.0
        %1066 = vmatprep.subr.mxu0 0.0
        %1067 = vmatpush1.msra.mxu0 0.0
        %1068 = vmatprep.subr.mxu0 0.0
        %1069 = vmatpush1.msra.mxu0 0.0
        %1070 = vmatprep.subr.mxu0 0.0
        %1071 = vmatpush1.msra.mxu0 0.0
        %1072 = vmatprep.subr.mxu0 0.0
        %1073 = vmatpush1.msra.mxu0 0.0
        %1074 = vmatprep.subr.mxu0 0.0
        %1075 = vmatpush1.msra.mxu0 0.0
        %1076 = vmatprep.subr.mxu0 0.0
        %1077 = vmatpush1.msra.mxu0 0.0
        %1078 = vmatprep.subr.mxu0 0.0
        %1079 = vmatpush1.msra.mxu0 0.0
        %1080 = vmatprep.subr.mxu0 0.0
        %1081 = vmatpush1.msra.mxu0 0.0
        %1082 = vmatprep.subr.mxu0 0.0
        %1083 = vmatpush1.msra.mxu0 0.0
        %1084 = vmatprep.subr.mxu0 0.0
        %1085 = vmatpush1.msra.mxu0 0.0
        %1086 = vmatprep.subr.mxu0 0.0
        %1087 = vmatpush1.msra.mxu0 0.0
        %1088 = vmatprep.subr.mxu0 0.0
        %1089 = vmatpush1.msra.mxu0 0.0
        %1090 = vmatprep.subr.mxu0 0.0
        %1091 = vmatpush1.msra.mxu0 0.0
        %1092 = vmatprep.subr.mxu0 0.0
        %1093 = vmatpush1.msra.mxu0 0.0
        %1094 = vmatprep.subr.mxu0 0.0
        %1095 = vmatpush1.msra.mxu0 0.0
        %1096 = vmatprep.subr.mxu0 0.0
        %1097 = vmatpush1.msra.mxu0 0.0
        %1098 = vmatprep.subr.mxu0 0.0
        %1099 = vmatpush1.msra.mxu0 0.0
        %1100 = vmatprep.subr.mxu0 0.0
        %1101 = vmatpush1.msra.mxu0 0.0
        %1102 = vmatprep.subr.mxu0 0.0
        %1103 = vmatpush1.msra.mxu0 0.0
        %1104 = vmatprep.mubr.f32.mxu0 0.0
        %1105 = vmatmul.mubr.f32.gmra.mrb[0].mxu0 %v1038
        %v1106 = vpop.f32.mrb[0].mxu0
        %v1107 = vadd.f32 %v1033, %v1106
        %v1108 = vpop.f32.mrb[0].mxu0
        %1109 = vdwg.mxu0
        %v1110 = vld [vmem:[%s5] sm:$0x1]
        %v1112 = vlaneseq
        %v1113 = vshrl.u32 %v1112, 7
        %v1114 = vsub.s32 0, %v1113
        %v1115 = vrot.slane %v1110, %v1114
        %v1117 = vadd.f32 %v1107, %v1115
        %v1118 = vmax.f32 %v1117, 0.0
        %v1119 = vld [vmem:[#allocation7] sm:$0xff]
        %v1120 = vld [vmem:[#allocation7 + $0x8] sm:$0xff]
        %v1121 = vld [vmem:[#allocation7 + $0x10] sm:$0xff]
        %v1122 = vld [vmem:[#allocation7 + $0x18] sm:$0xff]
        %v1123 = vld [vmem:[#allocation7 + $0x20] sm:$0xff]
        %v1124 = vld [vmem:[#allocation7 + $0x28] sm:$0xff]
        %v1125 = vld [vmem:[#allocation7 + $0x30] sm:$0xff]
        %v1126 = vld [vmem:[#allocation7 + $0x38] sm:$0xff]
        %v1127 = vld [vmem:[#allocation7 + $0x40] sm:$0xff]
        %v1128 = vld [vmem:[#allocation7 + $0x48] sm:$0xff]
        %v1129 = vld [vmem:[#allocation7 + $0x50] sm:$0xff]
        %v1130 = vld [vmem:[#allocation7 + $0x58] sm:$0xff]
        %v1131 = vld [vmem:[#allocation7 + $0x60] sm:$0xff]
        %v1132 = vld [vmem:[#allocation7 + $0x68] sm:$0xff]
        %v1133 = vld [vmem:[#allocation7 + $0x70] sm:$0xff]
        %v1134 = vld [vmem:[#allocation7 + $0x78] sm:$0xff]
        %v1135 = vld [vmem:[%s7] sm:$0x1]
        %v1137 = vlaneseq
        %v1138 = vshrl.u32 %v1137, 7
        %v1139 = vsub.s32 0, %v1138
        %v1140 = vrot.slane %v1135, %v1139
        %1142 = vmatprep.subr.mxu0 0.0
        %1143 = vmatpush1.msra.mxu0 %v1119
        %1144 = vmatprep.subr.mxu0 0.0
        %1145 = vmatpush1.msra.mxu0 %v1120
        %1146 = vmatprep.subr.mxu0 0.0
        %1147 = vmatpush1.msra.mxu0 %v1121
        %1148 = vmatprep.subr.mxu0 0.0
        %1149 = vmatpush1.msra.mxu0 %v1122
        %1150 = vmatprep.subr.mxu0 0.0
        %1151 = vmatpush1.msra.mxu0 %v1123
        %1152 = vmatprep.subr.mxu0 0.0
        %1153 = vmatpush1.msra.mxu0 %v1124
        %1154 = vmatprep.subr.mxu0 0.0
        %1155 = vmatpush1.msra.mxu0 %v1125
        %1156 = vmatprep.subr.mxu0 0.0
        %1157 = vmatpush1.msra.mxu0 %v1126
        %1158 = vmatprep.subr.mxu0 0.0
        %1159 = vmatpush1.msra.mxu0 %v1127
        %1160 = vmatprep.subr.mxu0 0.0
        %1161 = vmatpush1.msra.mxu0 %v1128
        %1162 = vmatprep.subr.mxu0 0.0
        %1163 = vmatpush1.msra.mxu0 %v1129
        %1164 = vmatprep.subr.mxu0 0.0
        %1165 = vmatpush1.msra.mxu0 %v1130
        %1166 = vmatprep.subr.mxu0 0.0
        %1167 = vmatpush1.msra.mxu0 %v1131
        %1168 = vmatprep.subr.mxu0 0.0
        %1169 = vmatpush1.msra.mxu0 %v1132
        %1170 = vmatprep.subr.mxu0 0.0
        %1171 = vmatpush1.msra.mxu0 %v1133
        %1172 = vmatprep.subr.mxu0 0.0
        %1173 = vmatpush1.msra.mxu0 %v1134
        %1174 = vmatprep.subr.mxu0 0.0
        %1175 = vmatpush1.msra.mxu0 0.0
        %1176 = vmatprep.subr.mxu0 0.0
        %1177 = vmatpush1.msra.mxu0 0.0
        %1178 = vmatprep.subr.mxu0 0.0
        %1179 = vmatpush1.msra.mxu0 0.0
        %1180 = vmatprep.subr.mxu0 0.0
        %1181 = vmatpush1.msra.mxu0 0.0
        %1182 = vmatprep.subr.mxu0 0.0
        %1183 = vmatpush1.msra.mxu0 0.0
        %1184 = vmatprep.subr.mxu0 0.0
        %1185 = vmatpush1.msra.mxu0 0.0
        %1186 = vmatprep.subr.mxu0 0.0
        %1187 = vmatpush1.msra.mxu0 0.0
        %1188 = vmatprep.subr.mxu0 0.0
        %1189 = vmatpush1.msra.mxu0 0.0
        %1190 = vmatprep.subr.mxu0 0.0
        %1191 = vmatpush1.msra.mxu0 0.0
        %1192 = vmatprep.subr.mxu0 0.0
        %1193 = vmatpush1.msra.mxu0 0.0
        %1194 = vmatprep.subr.mxu0 0.0
        %1195 = vmatpush1.msra.mxu0 0.0
        %1196 = vmatprep.subr.mxu0 0.0
        %1197 = vmatpush1.msra.mxu0 0.0
        %1198 = vmatprep.subr.mxu0 0.0
        %1199 = vmatpush1.msra.mxu0 0.0
        %1200 = vmatprep.subr.mxu0 0.0
        %1201 = vmatpush1.msra.mxu0 0.0
        %1202 = vmatprep.subr.mxu0 0.0
        %1203 = vmatpush1.msra.mxu0 0.0
        %1204 = vmatprep.subr.mxu0 0.0
        %1205 = vmatpush1.msra.mxu0 0.0
        %1206 = vmatprep.mubr.f32.mxu0 0.0
        %1207 = vmatmul.mubr.f32.gmra.mrb[0].mxu0 %v1118
        %v1208 = vpop.f32.mrb[0].mxu0
        %v1209 = vadd.f32 %v1140, %v1208
        %v1210 = vpop.f32.mrb[0].mxu0
        %1211 = vdwg.mxu0
        %v1212 = vmax.f32 %v1209, 0.0
        %v1213 = vld [vmem:[#allocation8] sm:$0xff]
        %v1214 = vld [vmem:[#allocation8 + $0x8] sm:$0xff]
        %v1215 = vld [vmem:[#allocation8 + $0x10] sm:$0xff]
        %v1216 = vld [vmem:[#allocation8 + $0x18] sm:$0xff]
        %v1217 = vld [vmem:[#allocation8 + $0x20] sm:$0xff]
        %v1218 = vld [vmem:[#allocation8 + $0x28] sm:$0xff]
        %v1219 = vld [vmem:[#allocation8 + $0x30] sm:$0xff]
        %v1220 = vld [vmem:[#allocation8 + $0x38] sm:$0xff]
        %v1221 = vld [vmem:[#allocation8 + $0x40] sm:$0xff]
        %v1222 = vld [vmem:[#allocation8 + $0x48] sm:$0xff]
        %v1223 = vld [vmem:[#allocation8 + $0x50] sm:$0xff]
        %v1224 = vld [vmem:[#allocation8 + $0x58] sm:$0xff]
        %v1225 = vld [vmem:[#allocation8 + $0x60] sm:$0xff]
        %v1226 = vld [vmem:[#allocation8 + $0x68] sm:$0xff]
        %v1227 = vld [vmem:[#allocation8 + $0x70] sm:$0xff]
        %v1228 = vld [vmem:[#allocation8 + $0x78] sm:$0xff]
        %v1229 = vld [vmem:[%s9] sm:$0x1]
        %v1231 = vlaneseq
        %v1232 = vshrl.u32 %v1231, 7
        %v1233 = vsub.s32 0, %v1232
        %v1234 = vrot.slane %v1229, %v1233
        %1236 = vmatprep.subr.mxu0 0.0
        %1237 = vmatpush1.msra.mxu0 %v1213
        %1238 = vmatprep.subr.mxu0 0.0
        %1239 = vmatpush1.msra.mxu0 %v1214
        %1240 = vmatprep.subr.mxu0 0.0
        %1241 = vmatpush1.msra.mxu0 %v1215
        %1242 = vmatprep.subr.mxu0 0.0
        %1243 = vmatpush1.msra.mxu0 %v1216
        %1244 = vmatprep.subr.mxu0 0.0
        %1245 = vmatpush1.msra.mxu0 %v1217
        %1246 = vmatprep.subr.mxu0 0.0
        %1247 = vmatpush1.msra.mxu0 %v1218
        %1248 = vmatprep.subr.mxu0 0.0
        %1249 = vmatpush1.msra.mxu0 %v1219
        %1250 = vmatprep.subr.mxu0 0.0
        %1251 = vmatpush1.msra.mxu0 %v1220
        %1252 = vmatprep.subr.mxu0 0.0
        %1253 = vmatpush1.msra.mxu0 %v1221
        %1254 = vmatprep.subr.mxu0 0.0
        %1255 = vmatpush1.msra.mxu0 %v1222
        %1256 = vmatprep.subr.mxu0 0.0
        %1257 = vmatpush1.msra.mxu0 %v1223
        %1258 = vmatprep.subr.mxu0 0.0
        %1259 = vmatpush1.msra.mxu0 %v1224
        %1260 = vmatprep.subr.mxu0 0.0
        %1261 = vmatpush1.msra.mxu0 %v1225
        %1262 = vmatprep.subr.mxu0 0.0
        %1263 = vmatpush1.msra.mxu0 %v1226
        %1264 = vmatprep.subr.mxu0 0.0
        %1265 = vmatpush1.msra.mxu0 %v1227
        %1266 = vmatprep.subr.mxu0 0.0
        %1267 = vmatpush1.msra.mxu0 %v1228
        %1268 = vmatprep.subr.mxu0 0.0
        %1269 = vmatpush1.msra.mxu0 0.0
        %1270 = vmatprep.subr.mxu0 0.0
        %1271 = vmatpush1.msra.mxu0 0.0
        %1272 = vmatprep.subr.mxu0 0.0
        %1273 = vmatpush1.msra.mxu0 0.0
        %1274 = vmatprep.subr.mxu0 0.0
        %1275 = vmatpush1.msra.mxu0 0.0
        %1276 = vmatprep.subr.mxu0 0.0
        %1277 = vmatpush1.msra.mxu0 0.0
        %1278 = vmatprep.subr.mxu0 0.0
        %1279 = vmatpush1.msra.mxu0 0.0
        %1280 = vmatprep.subr.mxu0 0.0
        %1281 = vmatpush1.msra.mxu0 0.0
        %1282 = vmatprep.subr.mxu0 0.0
        %1283 = vmatpush1.msra.mxu0 0.0
        %1284 = vmatprep.subr.mxu0 0.0
        %1285 = vmatpush1.msra.mxu0 0.0
        %1286 = vmatprep.subr.mxu0 0.0
        %1287 = vmatpush1.msra.mxu0 0.0
        %1288 = vmatprep.subr.mxu0 0.0
        %1289 = vmatpush1.msra.mxu0 0.0
        %1290 = vmatprep.subr.mxu0 0.0
        %1291 = vmatpush1.msra.mxu0 0.0
        %1292 = vmatprep.subr.mxu0 0.0
        %1293 = vmatpush1.msra.mxu0 0.0
        %1294 = vmatprep.subr.mxu0 0.0
        %1295 = vmatpush1.msra.mxu0 0.0
        %1296 = vmatprep.subr.mxu0 0.0
        %1297 = vmatpush1.msra.mxu0 0.0
        %1298 = vmatprep.subr.mxu0 0.0
        %1299 = vmatpush1.msra.mxu0 0.0
        %1300 = vmatprep.mubr.f32.mxu0 0.0
        %1301 = vmatmul.mubr.f32.gmra.mrb[0].mxu0 %v1212
        %v1302 = vpop.f32.mrb[0].mxu0
        %v1303 = vadd.f32 %v1234, %v1302
        %v1304 = vpop.f32.mrb[0].mxu0
        %1305 = vdwg.mxu0
        %v1306 = vmax.f32 %v1303, 0.0
        %v1307 = vld [vmem:[#allocation10] sm:$0xff]
        %v1308 = vld [vmem:[#allocation10 + $0x8] sm:$0xff]
        %v1309 = vld [vmem:[#allocation10 + $0x10] sm:$0xff]
        %v1310 = vld [vmem:[#allocation10 + $0x18] sm:$0xff]
        %v1311 = vld [vmem:[#allocation10 + $0x20] sm:$0xff]
        %v1312 = vld [vmem:[#allocation10 + $0x28] sm:$0xff]
        %v1313 = vld [vmem:[#allocation10 + $0x30] sm:$0xff]
        %v1314 = vld [vmem:[#allocation10 + $0x38] sm:$0xff]
        %v1315 = vld [vmem:[#allocation10 + $0x40] sm:$0xff]
        %v1316 = vld [vmem:[#allocation10 + $0x48] sm:$0xff]
        %v1317 = vld [vmem:[#allocation10 + $0x50] sm:$0xff]
        %v1318 = vld [vmem:[#allocation10 + $0x58] sm:$0xff]
        %v1319 = vld [vmem:[#allocation10 + $0x60] sm:$0xff]
        %v1320 = vld [vmem:[#allocation10 + $0x68] sm:$0xff]
        %v1321 = vld [vmem:[#allocation10 + $0x70] sm:$0xff]
        %v1322 = vld [vmem:[#allocation10 + $0x78] sm:$0xff]
        %v1323 = vld [vmem:[%s11] sm:$0x1]
        %v1325 = vlaneseq
        %v1326 = vshrl.u32 %v1325, 7
        %v1327 = vsub.s32 0, %v1326
        %v1328 = vrot.slane %v1323, %v1327
        %1330 = vmatprep.subr.mxu0 0.0
        %1331 = vmatpush1.msra.mxu0 %v1307
        %1332 = vmatprep.subr.mxu0 0.0
        %1333 = vmatpush1.msra.mxu0 %v1308
        %1334 = vmatprep.subr.mxu0 0.0
        %1335 = vmatpush1.msra.mxu0 %v1309
        %1336 = vmatprep.subr.mxu0 0.0
        %1337 = vmatpush1.msra.mxu0 %v1310
        %1338 = vmatprep.subr.mxu0 0.0
        %1339 = vmatpush1.msra.mxu0 %v1311
        %1340 = vmatprep.subr.mxu0 0.0
        %1341 = vmatpush1.msra.mxu0 %v1312
        %1342 = vmatprep.subr.mxu0 0.0
        %1343 = vmatpush1.msra.mxu0 %v1313
        %1344 = vmatprep.subr.mxu0 0.0
        %1345 = vmatpush1.msra.mxu0 %v1314
        %1346 = vmatprep.subr.mxu0 0.0
        %1347 = vmatpush1.msra.mxu0 %v1315
        %1348 = vmatprep.subr.mxu0 0.0
        %1349 = vmatpush1.msra.mxu0 %v1316
        %1350 = vmatprep.subr.mxu0 0.0
        %1351 = vmatpush1.msra.mxu0 %v1317
        %1352 = vmatprep.subr.mxu0 0.0
        %1353 = vmatpush1.msra.mxu0 %v1318
        %1354 = vmatprep.subr.mxu0 0.0
        %1355 = vmatpush1.msra.mxu0 %v1319
        %1356 = vmatprep.subr.mxu0 0.0
        %1357 = vmatpush1.msra.mxu0 %v1320
        %1358 = vmatprep.subr.mxu0 0.0
        %1359 = vmatpush1.msra.mxu0 %v1321
        %1360 = vmatprep.subr.mxu0 0.0
        %1361 = vmatpush1.msra.mxu0 %v1322
        %1362 = vmatprep.subr.mxu0 0.0
        %1363 = vmatpush1.msra.mxu0 0.0
        %1364 = vmatprep.subr.mxu0 0.0
        %1365 = vmatpush1.msra.mxu0 0.0
        %1366 = vmatprep.subr.mxu0 0.0
        %1367 = vmatpush1.msra.mxu0 0.0
        %1368 = vmatprep.subr.mxu0 0.0
        %1369 = vmatpush1.msra.mxu0 0.0
        %1370 = vmatprep.subr.mxu0 0.0
        %1371 = vmatpush1.msra.mxu0 0.0
        %1372 = vmatprep.subr.mxu0 0.0
        %1373 = vmatpush1.msra.mxu0 0.0
        %1374 = vmatprep.subr.mxu0 0.0
        %1375 = vmatpush1.msra.mxu0 0.0
        %1376 = vmatprep.subr.mxu0 0.0
        %1377 = vmatpush1.msra.mxu0 0.0
        %1378 = vmatprep.subr.mxu0 0.0
        %1379 = vmatpush1.msra.mxu0 0.0
        %1380 = vmatprep.subr.mxu0 0.0
        %1381 = vmatpush1.msra.mxu0 0.0
        %1382 = vmatprep.subr.mxu0 0.0
        %1383 = vmatpush1.msra.mxu0 0.0
        %1384 = vmatprep.subr.mxu0 0.0
        %1385 = vmatpush1.msra.mxu0 0.0
        %1386 = vmatprep.subr.mxu0 0.0
        %1387 = vmatpush1.msra.mxu0 0.0
        %1388 = vmatprep.subr.mxu0 0.0
        %1389 = vmatpush1.msra.mxu0 0.0
        %1390 = vmatprep.subr.mxu0 0.0
        %1391 = vmatpush1.msra.mxu0 0.0
        %1392 = vmatprep.subr.mxu0 0.0
        %1393 = vmatpush1.msra.mxu0 0.0
        %1394 = vmatprep.mubr.f32.mxu0 0.0
        %1395 = vmatmul.mubr.f32.gmra.mrb[0].mxu0 %v1306
        %v1396 = vpop.f32.mrb[0].mxu0
        %v1397 = vadd.f32 %v1328, %v1396
        %v1398 = vpop.f32.mrb[0].mxu0
        %1399 = vdwg.mxu0
        %v1400 = vmax.f32 %v1397, 0.0
        %v1401 = vld [vmem:[#allocation11] sm:$0xff]
        %v1402 = vld [vmem:[#allocation11 + $0x8] sm:$0xff]
        %v1403 = vld [vmem:[#allocation11 + $0x10] sm:$0xff]
        %v1404 = vld [vmem:[#allocation11 + $0x18] sm:$0xff]
        %v1405 = vld [vmem:[#allocation11 + $0x20] sm:$0xff]
        %v1406 = vld [vmem:[#allocation11 + $0x28] sm:$0xff]
        %v1407 = vld [vmem:[#allocation11 + $0x30] sm:$0xff]
        %v1408 = vld [vmem:[#allocation11 + $0x38] sm:$0xff]
        %v1409 = vld [vmem:[#allocation11 + $0x40] sm:$0xff]
        %v1410 = vld [vmem:[#allocation11 + $0x48] sm:$0xff]
        %v1411 = vld [vmem:[#allocation11 + $0x50] sm:$0xff]
        %v1412 = vld [vmem:[#allocation11 + $0x58] sm:$0xff]
        %v1413 = vld [vmem:[#allocation11 + $0x60] sm:$0xff]
        %v1414 = vld [vmem:[#allocation11 + $0x68] sm:$0xff]
        %v1415 = vld [vmem:[#allocation11 + $0x70] sm:$0xff]
        %v1416 = vld [vmem:[#allocation11 + $0x78] sm:$0xff]
        %v1417 = vld [vmem:[%s13] sm:$0x1]
        %v1419 = vlaneseq
        %v1420 = vshrl.u32 %v1419, 7
        %v1421 = vsub.s32 0, %v1420
        %v1422 = vrot.slane %v1417, %v1421
        %1424 = vmatprep.subr.mxu0 0.0
        %1425 = vmatpush1.msra.mxu0 %v1401
        %1426 = vmatprep.subr.mxu0 0.0
        %1427 = vmatpush1.msra.mxu0 %v1402
        %1428 = vmatprep.subr.mxu0 0.0
        %1429 = vmatpush1.msra.mxu0 %v1403
        %1430 = vmatprep.subr.mxu0 0.0
        %1431 = vmatpush1.msra.mxu0 %v1404
        %1432 = vmatprep.subr.mxu0 0.0
        %1433 = vmatpush1.msra.mxu0 %v1405
        %1434 = vmatprep.subr.mxu0 0.0
        %1435 = vmatpush1.msra.mxu0 %v1406
        %1436 = vmatprep.subr.mxu0 0.0
        %1437 = vmatpush1.msra.mxu0 %v1407
        %1438 = vmatprep.subr.mxu0 0.0
        %1439 = vmatpush1.msra.mxu0 %v1408
        %1440 = vmatprep.subr.mxu0 0.0
        %1441 = vmatpush1.msra.mxu0 %v1409
        %1442 = vmatprep.subr.mxu0 0.0
        %1443 = vmatpush1.msra.mxu0 %v1410
        %1444 = vmatprep.subr.mxu0 0.0
        %1445 = vmatpush1.msra.mxu0 %v1411
        %1446 = vmatprep.subr.mxu0 0.0
        %1447 = vmatpush1.msra.mxu0 %v1412
        %1448 = vmatprep.subr.mxu0 0.0
        %1449 = vmatpush1.msra.mxu0 %v1413
        %1450 = vmatprep.subr.mxu0 0.0
        %1451 = vmatpush1.msra.mxu0 %v1414
        %1452 = vmatprep.subr.mxu0 0.0
        %1453 = vmatpush1.msra.mxu0 %v1415
        %1454 = vmatprep.subr.mxu0 0.0
        %1455 = vmatpush1.msra.mxu0 %v1416
        %1456 = vmatprep.subr.mxu0 0.0
        %1457 = vmatpush1.msra.mxu0 0.0
        %1458 = vmatprep.subr.mxu0 0.0
        %1459 = vmatpush1.msra.mxu0 0.0
        %1460 = vmatprep.subr.mxu0 0.0
        %1461 = vmatpush1.msra.mxu0 0.0
        %1462 = vmatprep.subr.mxu0 0.0
        %1463 = vmatpush1.msra.mxu0 0.0
        %1464 = vmatprep.subr.mxu0 0.0
        %1465 = vmatpush1.msra.mxu0 0.0
        %1466 = vmatprep.subr.mxu0 0.0
        %1467 = vmatpush1.msra.mxu0 0.0
        %1468 = vmatprep.subr.mxu0 0.0
        %1469 = vmatpush1.msra.mxu0 0.0
        %1470 = vmatprep.subr.mxu0 0.0
        %1471 = vmatpush1.msra.mxu0 0.0
        %1472 = vmatprep.subr.mxu0 0.0
        %1473 = vmatpush1.msra.mxu0 0.0
        %1474 = vmatprep.subr.mxu0 0.0
        %1475 = vmatpush1.msra.mxu0 0.0
        %1476 = vmatprep.subr.mxu0 0.0
        %1477 = vmatpush1.msra.mxu0 0.0
        %1478 = vmatprep.subr.mxu0 0.0
        %1479 = vmatpush1.msra.mxu0 0.0
        %1480 = vmatprep.subr.mxu0 0.0
        %1481 = vmatpush1.msra.mxu0 0.0
        %1482 = vmatprep.subr.mxu0 0.0
        %1483 = vmatpush1.msra.mxu0 0.0
        %1484 = vmatprep.subr.mxu0 0.0
        %1485 = vmatpush1.msra.mxu0 0.0
        %1486 = vmatprep.subr.mxu0 0.0
        %1487 = vmatpush1.msra.mxu0 0.0
        %1488 = vmatprep.mubr.f32.mxu0 0.0
        %1489 = vmatmul.mubr.f32.gmra.mrb[0].mxu0 %v1400
        %v1490 = vpop.f32.mrb[0].mxu0
        %v1491 = vadd.f32 %v1422, %v1490
        %v1492 = vpop.f32.mrb[0].mxu0
        %1493 = vdwg.mxu0
        %1494 = vst [vmem:[%s559] sm:$0xff] %v1491
        %s1495 = sand.u32 %s344, 1
        %s1496 = scalar_lea.sflag [#allocation4], %s1495
        %s1497 = sand.u32 %s344, 1
        %s1498 = smul.addr %s1497, 8
        %s1499 = scalar_lea.vmem [#allocation13], %s1498
        // Predicated region
        $region101: #{tpu_custom_call.1} parent=75 // pred_check
          %p1500 = pneg %p354
        $region102: #{tpu_custom_call.1} parent=75 // pred_check_branch
          %1502 = sbr.rel (%p1500) target = $region104
        $region103: #{tpu_custom_call.1} parent=75 // pred_region
          %s1504 = ssub.s32 128, 128
          %1505 = vsyncadd %s1496, %s1504
          %s1506 = smul.addr %s32, 128
          %s1507 = scalar_lea.hbm %s14, %s1506
          %s1509 = sshll.u32 %s1499, 4
          %s1510 = int_to_ptr.vmem [resolvable:$true] %s1509
          %1512 = dma.vmem_to_hbm [thread:$0]  %s1510, 128, %s1507, %s1496
        $region104: #{tpu_custom_call.1} parent=75 // pred_fallthru
          _
      $region76: #{tpu_custom_call.1} parent=5 // pred_fallthru
        _
      %p1513 = scmp.le.s32.totalorder 2, %s27
      // Predicated region
      $region105: #{tpu_custom_call.1} parent=5 // pred_check
        %p1514 = pneg %p1513
      $region106: #{tpu_custom_call.1} parent=5 // pred_check_branch
        %1516 = sbr.rel (%p1514) target = $region108
      $region107: #{tpu_custom_call.1} parent=5 // pred_region
        %s1517 = ssub.s32 %s27, 2
        // Predicated region
        $region109: #{tpu_custom_call.1} parent=107 // pred_check
          %p1518 = pneg %p360
        $region110: #{tpu_custom_call.1} parent=107 // pred_check_branch
          %1520 = sbr.rel (%p1518) target = $region112
        $region111: #{tpu_custom_call.1} parent=107 // pred_region
          %s1521 = sand.u32 %s345, 1
          %s1522 = scalar_lea.sflag [#allocation4], %s1521
          %s1523 = sand.u32 %s345, 1
          %s1524 = smul.addr %s1523, 8
          %s1525 = scalar_lea.vmem [#allocation13], %s1524
          %1526 = dma.done %s1522, 128
        $region112: #{tpu_custom_call.1} parent=107 // pred_fallthru
          _
      $region108: #{tpu_custom_call.1} parent=5 // pred_fallthru
        _
    $region6: #{tpu_custom_call.1} parent=1 // loop_footer
      %s31 = sadd.s32 1, %s27
    $region7: #{tpu_custom_call.1} parent=1 // loop_footer_branch
      %26 = sbr.rel target = $region3
    $region8: #{tpu_custom_call.1} parent=1 // loop_exit
      _
    %1527 = vsyncpa [#allocation3], 1
    %s1528 = scalar_lea.sflag [#allocation3], 1
    %1529 = vsyncpa %s1528, 1
    %1530 = vsyncpa [#allocation6], 1
    %1531 = vsyncpa [#allocation9], 1
    %1532 = vsyncpa [#allocation12], 1
    %1533 = vsyncpa [#allocation4], 1
    %s1534 = scalar_lea.sflag [#allocation4], 1
    %1535 = vsyncpa %s1534, 1

</llo_original>
